<compile_context>
chip_gen: v6e
topology: v6e:2x2x1
jax: 0.10.0
libtpu: 0.0.40
codegen_flags: <defaults>
</compile_context>

<pallas_src>
import functools

import jax
import jax.numpy as jnp
from jax import lax
from jax.experimental import pallas as pl
from jax.experimental.pallas import tpu as pltpu


def _gate_block_kernel(x_ref, h_ref,
                       w_ir_ref, w_iz_ref, w_in_ref,
                       w_hr_ref, w_hz_ref, w_hn_ref,
                       b_r_ref, b_z_ref, b_in_ref, b_hn_ref,
                       gamma_ref, beta_ref, o_ref, *, eps: float):
    xb = x_ref[...]                               # bf16 (cast upstream; MXU-only operand)
    hf = h_ref[...].astype(jnp.float32)           # f32: residual + LayerNorm precision
    hb = hf.astype(jnp.bfloat16)                  # MXU operand

    def mm(a, w_ref):
        return jnp.dot(a, w_ref[...], preferred_element_type=jnp.float32)

    # GRU-style gates: matmuls on the MXU, sigmoid/tanh routed to the EUP slot.
    r = jax.nn.sigmoid(mm(xb, w_ir_ref) + mm(hb, w_hr_ref) + b_r_ref[...])
    z = jax.nn.sigmoid(mm(xb, w_iz_ref) + mm(hb, w_hz_ref) + b_z_ref[...])
    n = jnp.tanh(mm(xb, w_in_ref) + b_in_ref[...]
                 + r * (mm(hb, w_hn_ref) + b_hn_ref[...]))
    h_new = (1.0 - z) * n + z * hf

    # Dropout: identity (eval / inference mode).

    # Residual with h, then LayerNorm over the hidden dim, all in f32.
    y = h_new + hf
    mean = jnp.mean(y, axis=-1, keepdims=True)
    c = y - mean
    var = jnp.mean(c * c, axis=-1, keepdims=True)
    normed = c * lax.rsqrt(var + jnp.float32(eps))
    o_ref[...] = (normed * gamma_ref[...] + beta_ref[...]).astype(o_ref.dtype)


def _round_up(a: int, b: int) -> int:
    return ((a + b - 1) // b) * b


def _vmem_cap_bytes() -> int:
    """Per-generation scoped VMEM cap: v7x has 64 MiB/TC -> cap 32 MiB;
    v5e/v6e have 128 MiB -> cap 64 MiB."""
    kind = ""
    try:
        kind = jax.devices()[0].device_kind.lower()
    except Exception:
        pass
    if "v7" in kind or "7x" in kind:
        return 32 * 1024 * 1024
    return 64 * 1024 * 1024


def _plan_row_tiling(M: int, H: int, vmem_cap: int):
    """Pick (row_tile, padded_rows).  Rows are padded only to a multiple of 8, the tile
    is derived from the VMEM budget, and the grid is forced to >= 2 steps so v7x's two
    TensorCores both get work (costs one extra ~0.35us step on single-TC chips)."""
    M8 = _round_up(max(M, 1), 8)
    # Rough VMEM model: double-buffered x(bf16)+h(f32)+out(f32) tiles = 20 B/row/col,
    # plus ~8 live f32 [tile, H] intermediates inside the kernel ~= 32 B/row/col.
    per_row = 52 * H
    resident = 2 * 6 * H * H * 2 + 8 * H * 4   # double-buffered bf16 weights + vectors
    budget = int(vmem_cap * 0.6)
    tile_cap = max(8, min(1024, (budget - resident) // per_row))
    tile_cap = max(8, (tile_cap // 8) * 8)
    min_steps = 2 if M8 >= 16 else 1
    steps = max(min_steps, pl.cdiv(M8, tile_cap))
    tile = _round_up(pl.cdiv(M8, steps), 8)
    return tile, steps * tile


def gate_block_forward(x, h, w_ih, w_hh, b_ih, b_hh, gamma, beta, *,
                       eps: float = 1e-5, dropout_p: float = 0.0):
    """x, h: [..., H] -> [..., H].  Same semantics as GateBlock.forward (eval mode)."""
    del dropout_p  # dropout is identity at inference
    orig_shape = x.shape
    out_dtype = x.dtype
    H = orig_shape[-1]

    x2 = x.reshape(-1, H).astype(jnp.bfloat16)   # bit-identical: x is consumed only on the MXU
    h2 = h.reshape(-1, H).astype(jnp.float32)
    M = x2.shape[0]

    vmem_cap = _vmem_cap_bytes()
    tile, M_pad = _plan_row_tiling(M, H, vmem_cap)
    if M_pad != M:
        pad = ((0, M_pad - M), (0, 0))
        # Zero pad rows: LayerNorm sees var=0, rsqrt(var+eps) is finite, rows sliced off.
        x2 = jnp.pad(x2, pad)
        h2 = jnp.pad(h2, pad)

    # Per-gate [H, H] bf16 weight blocks (kernel never lane-slices a [*, 3H] tensor).
    def split3(w):
        w = w.astype(jnp.bfloat16)
        return w[:, 0:H], w[:, H:2 * H], w[:, 2 * H:3 * H]

    w_ir, w_iz, w_in = split3(w_ih)
    w_hr, w_hz, w_hn = split3(w_hh)
    b_ih_f = b_ih.astype(jnp.float32)
    b_hh_f = b_hh.astype(jnp.float32)
    b_r = (b_ih_f[0:H] + b_hh_f[0:H]).reshape(1, H)
    b_z = (b_ih_f[H:2 * H] + b_hh_f[H:2 * H]).reshape(1, H)
    b_in2 = b_ih_f[2 * H:3 * H].reshape(1, H)
    b_hn2 = b_hh_f[2 * H:3 * H].reshape(1, H)
    g2 = gamma.reshape(1, H).astype(jnp.float32)
    beta2 = beta.reshape(1, H).astype(jnp.float32)

    kernel = functools.partial(_gate_block_kernel, eps=eps)
    grid = (M_pad // tile,)

    row_spec = pl.BlockSpec((tile, H), lambda i: (i, 0))
    w_spec = pl.BlockSpec((H, H), lambda i: (0, 0))     # resident across the row grid
    v_spec = pl.BlockSpec((1, H), lambda i: (0, 0))     # bias / gamma / beta rows

    bytes_accessed = (
        M_pad * H * 2                                    # x ingress (bf16)
        + M_pad * H * 4                                  # h ingress (f32)
        + M_pad * H * jnp.dtype(out_dtype).itemsize      # output
        + 6 * H * H * 2                                  # per-gate bf16 weights
        + 6 * H * 4)                                     # biases + gamma/beta
    cost = pl.CostEstimate(
        flops=12 * M_pad * H * H,          # six [M,H] @ [H,H] matmuls
        transcendentals=3 * M_pad * H,     # 2x sigmoid + tanh
        bytes_accessed=bytes_accessed)

    out2 = pl.pallas_call(
        kernel,
        out_shape=jax.ShapeDtypeStruct((M_pad, H), out_dtype),
        grid=grid,
        in_specs=[row_spec, row_spec,
                  w_spec, w_spec, w_spec, w_spec, w_spec, w_spec,
                  v_spec, v_spec, v_spec, v_spec, v_spec, v_spec],
        out_specs=pl.BlockSpec((tile, H), lambda i: (i, 0)),
        compiler_params=pltpu.CompilerParams(
            dimension_semantics=("parallel",),           # rows shard over v7x's 2 TCs
            vmem_limit_bytes=vmem_cap),                  # per-generation budget
        cost_estimate=cost,
    )(x2, h2, w_ir, w_iz, w_in, w_hr, w_hz, w_hn,
      b_r, b_z, b_in2, b_hn2, g2, beta2)

    return out2[:M].reshape(orig_shape).astype(out_dtype)


def init_params(key, hidden_size, dtype=jnp.float32):
    """GRU-style GateCell params (uniform +-1/sqrt(H), like nn.GRUCell) + LayerNorm.
    Gate weights stored [in, 3*hidden] (transposed relative to PyTorch's [3H, H])."""
    k1, k2, k3, k4 = jax.random.split(key, 4)
    bound = 1.0 / (hidden_size ** 0.5)
    w_ih = jax.random.uniform(k1, (hidden_size, 3 * hidden_size), dtype,
                              minval=-bound, maxval=bound)
    w_hh = jax.random.uniform(k2, (hidden_size, 3 * hidden_size), dtype,
                              minval=-bound, maxval=bound)
    b_ih = jax.random.uniform(k3, (3 * hidden_size,), dtype,
                              minval=-bound, maxval=bound)
    b_hh = jax.random.uniform(k4, (3 * hidden_size,), dtype,
                              minval=-bound, maxval=bound)
    gamma = jnp.ones((hidden_size,), dtype)
    beta = jnp.zeros((hidden_size,), dtype)
    return w_ih, w_hh, b_ih, b_hh, gamma, beta


def _reference(x, h, w_ih, w_hh, b_ih, b_hh, gamma, beta, eps=1e-5):
    """Pure-JAX reference using the same bf16-matmul / f32-elementwise recipe."""
    H = x.shape[-1]
    gi = jnp.dot(x.astype(jnp.bfloat16), w_ih.astype(jnp.bfloat16),
                 preferred_element_type=jnp.float32) + b_ih
    gh = jnp.dot(h.astype(jnp.bfloat16), w_hh.astype(jnp.bfloat16),
                 preferred_element_type=jnp.float32) + b_hh
    r = jax.nn.sigmoid(gi[..., 0:H] + gh[..., 0:H])
    z = jax.nn.sigmoid(gi[..., H:2 * H] + gh[..., H:2 * H])
    n = jnp.tanh(gi[..., 2 * H:] + r * gh[..., 2 * H:])
    h_new = (1.0 - z) * n + z * h
    zres = h_new + h                     # dropout identity at eval
    mean = jnp.mean(zres, axis=-1, keepdims=True)
    var = jnp.mean((zres - mean) ** 2, axis=-1, keepdims=True)
    return (zres - mean) / jnp.sqrt(var + eps) * gamma + beta


if __name__ == "__main__":
    # batch=2, seq=8, hidden=128 (hidden a multiple of 128 => lane-dense stores)
    B, S, H = 2, 8, 128
    key = jax.random.PRNGKey(0)
    kx, kh, kp = jax.random.split(key, 3)

    x = jax.random.normal(kx, (B, S, H), jnp.float32)
    h = jax.random.normal(kh, (B, S, H), jnp.float32)
    params = init_params(kp, H)

    out = gate_block_forward(x, h, *params)
    out = jax.block_until_ready(out)

    ref = _reference(x, h, *params)
    assert out.shape == (B, S, H)
    assert jnp.allclose(out, ref, atol=2e-3, rtol=2e-3), "mismatch vs JAX reference"

    print("KERNEL_OK")
</pallas_src>

<mosaic_0001>
module attributes {stable_mosaic.version = 11 : i64} {
  func.func @_gate_block_kernel(%arg0: i32, %arg1: memref<8x128xbf16, #tpu.memory_space<vmem>>, %arg2: memref<8x128xf32, #tpu.memory_space<vmem>>, %arg3: memref<128x128xbf16, #tpu.memory_space<vmem>>, %arg4: memref<128x128xbf16, #tpu.memory_space<vmem>>, %arg5: memref<128x128xbf16, #tpu.memory_space<vmem>>, %arg6: memref<128x128xbf16, #tpu.memory_space<vmem>>, %arg7: memref<128x128xbf16, #tpu.memory_space<vmem>>, %arg8: memref<128x128xbf16, #tpu.memory_space<vmem>>, %arg9: memref<1x128xf32, #tpu.memory_space<vmem>>, %arg10: memref<1x128xf32, #tpu.memory_space<vmem>>, %arg11: memref<1x128xf32, #tpu.memory_space<vmem>>, %arg12: memref<1x128xf32, #tpu.memory_space<vmem>>, %arg13: memref<1x128xf32, #tpu.memory_space<vmem>>, %arg14: memref<1x128xf32, #tpu.memory_space<vmem>>, %arg15: memref<8x128xf32, #tpu.memory_space<vmem>>) attributes {dimension_semantics = [#tpu.dimension_semantics<parallel>], iteration_bounds = array<i64: 2>, scalar_prefetch = 0 : i64, scratch_operands = 0 : i64, tpu.core_type = #tpu.core_type<tc>, window_params = [{transform_indices = @transform_0, window_bounds = array<i64: 8, 128>}, {transform_indices = @transform_1, window_bounds = array<i64: 8, 128>}, {pipeline_mode = #tpu.pipeline_mode<synchronous>, transform_indices = @transform_2, window_bounds = array<i64: 128, 128>}, {pipeline_mode = #tpu.pipeline_mode<synchronous>, transform_indices = @transform_3, window_bounds = array<i64: 128, 128>}, {pipeline_mode = #tpu.pipeline_mode<synchronous>, transform_indices = @transform_4, window_bounds = array<i64: 128, 128>}, {pipeline_mode = #tpu.pipeline_mode<synchronous>, transform_indices = @transform_5, window_bounds = array<i64: 128, 128>}, {pipeline_mode = #tpu.pipeline_mode<synchronous>, transform_indices = @transform_6, window_bounds = array<i64: 128, 128>}, {pipeline_mode = #tpu.pipeline_mode<synchronous>, transform_indices = @transform_7, window_bounds = array<i64: 128, 128>}, {pipeline_mode = #tpu.pipeline_mode<synchronous>, transform_indices = @transform_8, window_bounds = array<i64: 1, 128>}, {pipeline_mode = #tpu.pipeline_mode<synchronous>, transform_indices = @transform_9, window_bounds = array<i64: 1, 128>}, {pipeline_mode = #tpu.pipeline_mode<synchronous>, transform_indices = @transform_10, window_bounds = array<i64: 1, 128>}, {pipeline_mode = #tpu.pipeline_mode<synchronous>, transform_indices = @transform_11, window_bounds = array<i64: 1, 128>}, {pipeline_mode = #tpu.pipeline_mode<synchronous>, transform_indices = @transform_12, window_bounds = array<i64: 1, 128>}, {pipeline_mode = #tpu.pipeline_mode<synchronous>, transform_indices = @transform_13, window_bounds = array<i64: 1, 128>}, {transform_indices = @transform_14, window_bounds = array<i64: 8, 128>}]} {
    %c0 = arith.constant 0 : index
    %c0_0 = arith.constant 0 : index
    %0 = vector.load %arg1[%c0, %c0_0] : memref<8x128xbf16, #tpu.memory_space<vmem>>, vector<8x128xbf16>
    %c0_1 = arith.constant 0 : index
    %c0_2 = arith.constant 0 : index
    %1 = vector.load %arg2[%c0_1, %c0_2] : memref<8x128xf32, #tpu.memory_space<vmem>>, vector<8x128xf32>
    %2 = arith.truncf %1 : vector<8x128xf32> to vector<8x128xbf16>
    %c0_3 = arith.constant 0 : index
    %c0_4 = arith.constant 0 : index
    %3 = vector.load %arg3[%c0_3, %c0_4] : memref<128x128xbf16, #tpu.memory_space<vmem>>, vector<128x128xbf16>
    %cst = arith.constant dense<0.000000e+00> : vector<8x128xf32>
    %4 = tpu.matmul %0, %3, %cst {dimension_numbers = #tpu.dot_dimension_numbers<[1], [0], [0], [1], [0, 0, 1, 1], [], []>} : vector<8x128xbf16>, vector<128x128xbf16>, vector<8x128xf32> -> vector<8x128xf32>
    %c0_5 = arith.constant 0 : index
    %c0_6 = arith.constant 0 : index
    %5 = vector.load %arg6[%c0_5, %c0_6] : memref<128x128xbf16, #tpu.memory_space<vmem>>, vector<128x128xbf16>
    %cst_7 = arith.constant dense<0.000000e+00> : vector<8x128xf32>
    %6 = tpu.matmul %2, %5, %cst_7 {dimension_numbers = #tpu.dot_dimension_numbers<[1], [0], [0], [1], [0, 0, 1, 1], [], []>} : vector<8x128xbf16>, vector<128x128xbf16>, vector<8x128xf32> -> vector<8x128xf32>
    %7 = arith.addf %4, %6 : vector<8x128xf32>
    %c0_8 = arith.constant 0 : index
    %c0_9 = arith.constant 0 : index
    %8 = vector.load %arg9[%c0_8, %c0_9] : memref<1x128xf32, #tpu.memory_space<vmem>>, vector<1x128xf32>
    %9 = vector.broadcast %8 : vector<1x128xf32> to vector<8x128xf32>
    %10 = arith.addf %7, %9 : vector<8x128xf32>
    %11 = arith.negf %10 : vector<8x128xf32>
    %12 = math.exp %11 : vector<8x128xf32>
    %cst_10 = arith.constant 1.000000e+00 : f32
    %13 = vector.broadcast %cst_10 : f32 to vector<8x128xf32>
    %14 = arith.addf %13, %12 : vector<8x128xf32>
    %15 = arith.divf %13, %14 : vector<8x128xf32>
    %c0_11 = arith.constant 0 : index
    %c0_12 = arith.constant 0 : index
    %16 = vector.load %arg4[%c0_11, %c0_12] : memref<128x128xbf16, #tpu.memory_space<vmem>>, vector<128x128xbf16>
    %cst_13 = arith.constant dense<0.000000e+00> : vector<8x128xf32>
    %17 = tpu.matmul %0, %16, %cst_13 {dimension_numbers = #tpu.dot_dimension_numbers<[1], [0], [0], [1], [0, 0, 1, 1], [], []>} : vector<8x128xbf16>, vector<128x128xbf16>, vector<8x128xf32> -> vector<8x128xf32>
    %c0_14 = arith.constant 0 : index
    %c0_15 = arith.constant 0 : index
    %18 = vector.load %arg7[%c0_14, %c0_15] : memref<128x128xbf16, #tpu.memory_space<vmem>>, vector<128x128xbf16>
    %cst_16 = arith.constant dense<0.000000e+00> : vector<8x128xf32>
    %19 = tpu.matmul %2, %18, %cst_16 {dimension_numbers = #tpu.dot_dimension_numbers<[1], [0], [0], [1], [0, 0, 1, 1], [], []>} : vector<8x128xbf16>, vector<128x128xbf16>, vector<8x128xf32> -> vector<8x128xf32>
    %20 = arith.addf %17, %19 : vector<8x128xf32>
    %c0_17 = arith.constant 0 : index
    %c0_18 = arith.constant 0 : index
    %21 = vector.load %arg10[%c0_17, %c0_18] : memref<1x128xf32, #tpu.memory_space<vmem>>, vector<1x128xf32>
    %22 = vector.broadcast %21 : vector<1x128xf32> to vector<8x128xf32>
    %23 = arith.addf %20, %22 : vector<8x128xf32>
    %24 = arith.negf %23 : vector<8x128xf32>
    %25 = math.exp %24 : vector<8x128xf32>
    %cst_19 = arith.constant 1.000000e+00 : f32
    %26 = vector.broadcast %cst_19 : f32 to vector<8x128xf32>
    %27 = arith.addf %26, %25 : vector<8x128xf32>
    %28 = arith.divf %26, %27 : vector<8x128xf32>
    %c0_20 = arith.constant 0 : index
    %c0_21 = arith.constant 0 : index
    %29 = vector.load %arg5[%c0_20, %c0_21] : memref<128x128xbf16, #tpu.memory_space<vmem>>, vector<128x128xbf16>
    %cst_22 = arith.constant dense<0.000000e+00> : vector<8x128xf32>
    %30 = tpu.matmul %0, %29, %cst_22 {dimension_numbers = #tpu.dot_dimension_numbers<[1], [0], [0], [1], [0, 0, 1, 1], [], []>} : vector<8x128xbf16>, vector<128x128xbf16>, vector<8x128xf32> -> vector<8x128xf32>
    %c0_23 = arith.constant 0 : index
    %c0_24 = arith.constant 0 : index
    %31 = vector.load %arg11[%c0_23, %c0_24] : memref<1x128xf32, #tpu.memory_space<vmem>>, vector<1x128xf32>
    %32 = vector.broadcast %31 : vector<1x128xf32> to vector<8x128xf32>
    %33 = arith.addf %30, %32 : vector<8x128xf32>
    %c0_25 = arith.constant 0 : index
    %c0_26 = arith.constant 0 : index
    %34 = vector.load %arg8[%c0_25, %c0_26] : memref<128x128xbf16, #tpu.memory_space<vmem>>, vector<128x128xbf16>
    %cst_27 = arith.constant dense<0.000000e+00> : vector<8x128xf32>
    %35 = tpu.matmul %2, %34, %cst_27 {dimension_numbers = #tpu.dot_dimension_numbers<[1], [0], [0], [1], [0, 0, 1, 1], [], []>} : vector<8x128xbf16>, vector<128x128xbf16>, vector<8x128xf32> -> vector<8x128xf32>
    %c0_28 = arith.constant 0 : index
    %c0_29 = arith.constant 0 : index
    %36 = vector.load %arg12[%c0_28, %c0_29] : memref<1x128xf32, #tpu.memory_space<vmem>>, vector<1x128xf32>
    %37 = vector.broadcast %36 : vector<1x128xf32> to vector<8x128xf32>
    %38 = arith.addf %35, %37 : vector<8x128xf32>
    %39 = arith.mulf %15, %38 : vector<8x128xf32>
    %40 = arith.addf %33, %39 : vector<8x128xf32>
    %41 = math.tanh %40 : vector<8x128xf32>
    %cst_30 = arith.constant 1.000000e+00 : f32
    %42 = vector.broadcast %cst_30 : f32 to vector<8x128xf32>
    %43 = arith.subf %42, %28 : vector<8x128xf32>
    %44 = arith.mulf %43, %41 : vector<8x128xf32>
    %45 = arith.mulf %28, %1 : vector<8x128xf32>
    %46 = arith.addf %44, %45 : vector<8x128xf32>
    %47 = arith.addf %46, %1 : vector<8x128xf32>
    %cst_31 = arith.constant dense<0.000000e+00> : vector<8xf32>
    %48 = vector.multi_reduction <add>, %47, %cst_31 [1] : vector<8x128xf32> to vector<8xf32>
    %49 = vector.shape_cast %48 : vector<8xf32> to vector<8x1xf32>
    %cst_32 = arith.constant 1.280000e+02 : f32
    %50 = vector.broadcast %cst_32 : f32 to vector<8x1xf32>
    %51 = arith.divf %49, %50 : vector<8x1xf32>
    %52 = vector.broadcast %51 : vector<8x1xf32> to vector<8x128xf32>
    %53 = arith.subf %47, %52 : vector<8x128xf32>
    %54 = arith.mulf %53, %53 : vector<8x128xf32>
    %cst_33 = arith.constant dense<0.000000e+00> : vector<8xf32>
    %55 = vector.multi_reduction <add>, %54, %cst_33 [1] : vector<8x128xf32> to vector<8xf32>
    %56 = vector.shape_cast %55 : vector<8xf32> to vector<8x1xf32>
    %cst_34 = arith.constant 1.280000e+02 : f32
    %57 = vector.broadcast %cst_34 : f32 to vector<8x1xf32>
    %58 = arith.divf %56, %57 : vector<8x1xf32>
    %cst_35 = arith.constant 9.99999974E-6 : f32
    %59 = vector.broadcast %cst_35 : f32 to vector<8x1xf32>
    %60 = arith.addf %58, %59 : vector<8x1xf32>
    %61 = math.rsqrt %60 : vector<8x1xf32>
    %62 = vector.broadcast %61 : vector<8x1xf32> to vector<8x128xf32>
    %63 = arith.mulf %53, %62 : vector<8x128xf32>
    %c0_36 = arith.constant 0 : index
    %c0_37 = arith.constant 0 : index
    %64 = vector.load %arg13[%c0_36, %c0_37] : memref<1x128xf32, #tpu.memory_space<vmem>>, vector<1x128xf32>
    %65 = vector.broadcast %64 : vector<1x128xf32> to vector<8x128xf32>
    %66 = arith.mulf %63, %65 : vector<8x128xf32>
    %c0_38 = arith.constant 0 : index
    %c0_39 = arith.constant 0 : index
    %67 = vector.load %arg14[%c0_38, %c0_39] : memref<1x128xf32, #tpu.memory_space<vmem>>, vector<1x128xf32>
    %68 = vector.broadcast %67 : vector<1x128xf32> to vector<8x128xf32>
    %69 = arith.addf %66, %68 : vector<8x128xf32>
    %c0_40 = arith.constant 0 : index
    %c0_41 = arith.constant 0 : index
    %70 = vector.load %arg15[%c0_40, %c0_41] : memref<8x128xf32, #tpu.memory_space<vmem>>, vector<8x128xf32>
    tpu.vector_store %arg15[%c0_40, %c0_41], %69 {strides = array<i32>} : memref<8x128xf32, #tpu.memory_space<vmem>>, vector<8x128xf32>,
    return
  }
  func.func @transform_0(%arg0: i32) -> (i32, i32) {
    %c0_i32 = arith.constant 0 : i32
    %c0_i32_0 = arith.constant 0 : i32
    return %arg0, %c0_i32 : i32, i32
  }
  func.func @transform_1(%arg0: i32) -> (i32, i32) {
    %c0_i32 = arith.constant 0 : i32
    %c0_i32_0 = arith.constant 0 : i32
    return %arg0, %c0_i32 : i32, i32
  }
  func.func @transform_2(%arg0: i32) -> (i32, i32) {
    %c0_i32 = arith.constant 0 : i32
    %c0_i32_0 = arith.constant 0 : i32
    %c0_i32_1 = arith.constant 0 : i32
    return %c0_i32, %c0_i32_0 : i32, i32
  }
  func.func @transform_3(%arg0: i32) -> (i32, i32) {
    %c0_i32 = arith.constant 0 : i32
    %c0_i32_0 = arith.constant 0 : i32
    %c0_i32_1 = arith.constant 0 : i32
    return %c0_i32, %c0_i32_0 : i32, i32
  }
  func.func @transform_4(%arg0: i32) -> (i32, i32) {
    %c0_i32 = arith.constant 0 : i32
    %c0_i32_0 = arith.constant 0 : i32
    %c0_i32_1 = arith.constant 0 : i32
    return %c0_i32, %c0_i32_0 : i32, i32
  }
  func.func @transform_5(%arg0: i32) -> (i32, i32) {
    %c0_i32 = arith.constant 0 : i32
    %c0_i32_0 = arith.constant 0 : i32
    %c0_i32_1 = arith.constant 0 : i32
    return %c0_i32, %c0_i32_0 : i32, i32
  }
  func.func @transform_6(%arg0: i32) -> (i32, i32) {
    %c0_i32 = arith.constant 0 : i32
    %c0_i32_0 = arith.constant 0 : i32
    %c0_i32_1 = arith.constant 0 : i32
    return %c0_i32, %c0_i32_0 : i32, i32
  }
  func.func @transform_7(%arg0: i32) -> (i32, i32) {
    %c0_i32 = arith.constant 0 : i32
    %c0_i32_0 = arith.constant 0 : i32
    %c0_i32_1 = arith.constant 0 : i32
    return %c0_i32, %c0_i32_0 : i32, i32
  }
  func.func @transform_8(%arg0: i32) -> (i32, i32) {
    %c0_i32 = arith.constant 0 : i32
    %c0_i32_0 = arith.constant 0 : i32
    %c0_i32_1 = arith.constant 0 : i32
    return %c0_i32, %c0_i32_0 : i32, i32
  }
  func.func @transform_9(%arg0: i32) -> (i32, i32) {
    %c0_i32 = arith.constant 0 : i32
    %c0_i32_0 = arith.constant 0 : i32
    %c0_i32_1 = arith.constant 0 : i32
    return %c0_i32, %c0_i32_0 : i32, i32
  }
  func.func @transform_10(%arg0: i32) -> (i32, i32) {
    %c0_i32 = arith.constant 0 : i32
    %c0_i32_0 = arith.constant 0 : i32
    %c0_i32_1 = arith.constant 0 : i32
    return %c0_i32, %c0_i32_0 : i32, i32
  }
  func.func @transform_11(%arg0: i32) -> (i32, i32) {
    %c0_i32 = arith.constant 0 : i32
    %c0_i32_0 = arith.constant 0 : i32
    %c0_i32_1 = arith.constant 0 : i32
    return %c0_i32, %c0_i32_0 : i32, i32
  }
  func.func @transform_12(%arg0: i32) -> (i32, i32) {
    %c0_i32 = arith.constant 0 : i32
    %c0_i32_0 = arith.constant 0 : i32
    %c0_i32_1 = arith.constant 0 : i32
    return %c0_i32, %c0_i32_0 : i32, i32
  }
  func.func @transform_13(%arg0: i32) -> (i32, i32) {
    %c0_i32 = arith.constant 0 : i32
    %c0_i32_0 = arith.constant 0 : i32
    %c0_i32_1 = arith.constant 0 : i32
    return %c0_i32, %c0_i32_0 : i32, i32
  }
  func.func @transform_14(%arg0: i32) -> (i32, i32) {
    %c0_i32 = arith.constant 0 : i32
    %c0_i32_0 = arith.constant 0 : i32
    return %arg0, %c0_i32 : i32, i32
  }
}

</mosaic_0001>

<llo_original>
// kernel: tpu_custom_call.1
$region0: #{tpu_custom_call.1}
  #allocation0 [shape = 'u32[]', space=smem, size = 0x4, offset = 0x4, fixed_abs, tag = 'smem constant byte address 0x4 - core index']
  #allocation1 [shape = 'u32[144,128]{1,0:T(1,128)}', space=vmem, size = 0x12000, scoped, tag = 'internal scratch']
  %s0 = inlined_call_operand.hbm [shape: bf16[16,128], index: 0, kind: input, shape index: {}]
  %s1 = inlined_call_operand.hbm [shape: f32[16,128], index: 1, kind: input, shape index: {}]
  %s2 = inlined_call_operand.hbm [shape: bf16[128,128], index: 2, kind: input, shape index: {}]
  %s3 = inlined_call_operand.hbm [shape: bf16[128,128], index: 3, kind: input, shape index: {}]
  %s4 = inlined_call_operand.hbm [shape: bf16[128,128], index: 4, kind: input, shape index: {}]
  %s5 = inlined_call_operand.hbm [shape: bf16[128,128], index: 5, kind: input, shape index: {}]
  %s6 = inlined_call_operand.hbm [shape: bf16[128,128], index: 6, kind: input, shape index: {}]
  %s7 = inlined_call_operand.hbm [shape: bf16[128,128], index: 7, kind: input, shape index: {}]
  %s8 = inlined_call_operand.vmem [shape: f32[1,128], index: 8, kind: input, shape index: {}]
  %s9 = inlined_call_operand.vmem [shape: f32[1,128], index: 9, kind: input, shape index: {}]
  %s10 = inlined_call_operand.vmem [shape: f32[1,128], index: 10, kind: input, shape index: {}]
  %s11 = inlined_call_operand.vmem [shape: f32[1,128], index: 11, kind: input, shape index: {}]
  %s12 = inlined_call_operand.vmem [shape: f32[1,128], index: 12, kind: input, shape index: {}]
  %s13 = inlined_call_operand.vmem [shape: f32[1,128], index: 13, kind: input, shape index: {}]
  %s14 = inlined_call_operand.hbm [shape: f32[16,128], index: 14, kind: output, shape index: {}]
  %s15 = sld [smem:[#allocation0]]
  $region121: #{tpu_custom_call.1} parent=0
    _
  %s17 = ssub.s32 1, %s15
  %s18 = scalar_select 0, %s17, %s15
  $region1: #{tpu_custom_call.1} parent=0
    #allocation2 [shape = 'u8[4096]{0}', space=vmem, size = 0x1000, scoped, tag = 'input window, operand 0']
    #allocation3 [shape = 's32[2]{0}', space=sflag, size = 0x8, scoped, tag = 'scoped memory for tpu_custom_call.1']
    #allocation4 [shape = 's32[2]{0}', space=sflag, size = 0x8, scoped, tag = 'scoped memory for tpu_custom_call.1']
    #allocation5 [shape = 'u8[8192]{0}', space=vmem, size = 0x2000, scoped, tag = 'input window, operand 1']
    #allocation6 [shape = 's32[2]{0}', space=sflag, size = 0x8, scoped, tag = 'scoped memory for tpu_custom_call.1']
    #allocation7 [shape = 'u8[32768]{0}', space=vmem, size = 0x8000, scoped, tag = 'input window, operand 2, single buffered']
    #allocation8 [shape = 'u8[32768]{0}', space=vmem, size = 0x8000, scoped, tag = 'input window, operand 3, single buffered']
    #allocation9 [shape = 's32[1]{0}', space=sflag, size = 0x4, scoped, tag = 'scoped memory for tpu_custom_call.1']
    #allocation10 [shape = 'u8[32768]{0}', space=vmem, size = 0x8000, scoped, tag = 'input window, operand 4, single buffered']
    #allocation11 [shape = 'u8[32768]{0}', space=vmem, size = 0x8000, scoped, tag = 'input window, operand 5, single buffered']
    #allocation12 [shape = 's32[1]{0}', space=sflag, size = 0x4, scoped, tag = 'scoped memory for tpu_custom_call.1']
    #allocation13 [shape = 'u8[32768]{0}', space=vmem, size = 0x8000, scoped, tag = 'input window, operand 6, single buffered']
    #allocation14 [shape = 'u8[32768]{0}', space=vmem, size = 0x8000, scoped, tag = 'input window, operand 7, single buffered']
    #allocation15 [shape = 's32[1]{0}', space=sflag, size = 0x4, scoped, tag = 'scoped memory for tpu_custom_call.1']
    #allocation16 [shape = 'u8[8192]{0}', space=vmem, size = 0x2000, scoped, tag = 'output window, operand 0']
    %19 = vsyncpa [#allocation3], 0
    %s20 = scalar_lea.sflag [#allocation3], 1
    %21 = vsyncpa %s20, 0
    %22 = vsyncpa [#allocation6], 0
    %s23 = scalar_lea.sflag [#allocation6], 1
    %24 = vsyncpa %s23, 0
    %25 = vsyncpa [#allocation9], 0
    %26 = vsyncpa [#allocation12], 0
    %27 = vsyncpa [#allocation15], 0
    %28 = vsyncpa [#allocation4], 0
    %s29 = scalar_lea.sflag [#allocation4], 1
    %30 = vsyncpa %s29, 0
    loop: start=0, step=1, limit=4
    $region2: #{tpu_custom_call.1} parent=1 // loop_pre_header
      _
    $region3: #{tpu_custom_call.1} parent=1 // loop_header
      %s32 = sphi 0, %s36
      %p33 = scmp.ge.s32.totalorder %s32, 4
      %s42 = sphi 0, %s44
      %s45 = sphi 0, %s42
      %s46 = sphi 0, %s45
      %s62 = sphi 0, %s46
      %s68 = sphi 0, %s70
      %s71 = sphi 0, %s68
      %s72 = sphi 0, %s71
      %s88 = sphi 0, %s72
      %s92 = sphi 0, %s92
      %s94 = sphi 0, %s92
      %s95 = sphi 0, %s94
      %s109 = sphi 0, %s95
      %s113 = sphi 0, %s113
      %s115 = sphi 0, %s113
      %s116 = sphi 0, %s115
      %s130 = sphi 0, %s116
      %s134 = sphi 0, %s134
      %s136 = sphi 0, %s134
      %s137 = sphi 0, %s136
      %s151 = sphi 0, %s137
      %s155 = sphi 0, %s155
      %s157 = sphi 0, %s155
      %s158 = sphi 0, %s157
      %s172 = sphi 0, %s158
      %s176 = sphi 0, %s176
      %s178 = sphi 0, %s176
      %s179 = sphi 0, %s178
      %s193 = sphi 0, %s179
      %s197 = sphi 0, %s197
      %s199 = sphi 0, %s197
      %s200 = sphi 0, %s199
      %s214 = sphi 0, %s200
      %s218 = sphi 0, %s218
      %s220 = sphi 0, %s218
      %s221 = sphi 0, %s220
      %s235 = sphi 0, %s221
      %s239 = sphi 0, %s239
      %s241 = sphi 0, %s239
      %s242 = sphi 0, %s241
      %s256 = sphi 0, %s242
      %s260 = sphi 0, %s260
      %s262 = sphi 0, %s260
      %s263 = sphi 0, %s262
      %s277 = sphi 0, %s263
      %s281 = sphi 0, %s281
      %s283 = sphi 0, %s281
      %s284 = sphi 0, %s283
      %s298 = sphi 0, %s284
      %s302 = sphi 0, %s302
      %s304 = sphi 0, %s302
      %s305 = sphi 0, %s304
      %s319 = sphi 0, %s305
      %s323 = sphi 0, %s323
      %s325 = sphi 0, %s323
      %s326 = sphi 0, %s325
      %s340 = sphi 0, %s326
      %s346 = sphi 0, %s348
      %s349 = sphi 0, %s346
      %s350 = sphi 0, %s349
      %s366 = sphi 0, %s350
    $region4: #{tpu_custom_call.1} parent=1 // loop_header_branch
      %35 = sbr.rel (%p33) target = $region8
    $region5: #{tpu_custom_call.1} parent=1 // loop_body
      %s37 = ssub.s32 %s32, 1
      %s38 = ssub.s32 %s32, 2
      %s39 = sadd.s32 %s32, 1
      %s40 = ssub.s32 %s32, %s39
      %p41 = scmp.eq.s32.totalorder %s40, 0
      %s43 = sadd.s32 %s42, 1
      %s44 = scalar_select %p41, %s42, %s43
      %p47 = pneg %p41
      %p48 = scmp.eq.s32.totalorder %s32, 1
      %p49 = por %p47, %p48
      %p50 = scmp.ne.s32.totalorder %s42, %s45
      %p51 = scmp.eq.s32.totalorder %s32, 0
      %p52 = por %p50, %p51
      %p53 = scmp.ne.s32.totalorder %s42, %s45
      %p54 = scmp.eq.s32.totalorder %s37, 1
      %p55 = por %p53, %p54
      %p56 = scmp.ne.s32.totalorder %s45, %s46
      %p57 = scmp.eq.s32.totalorder %s37, 0
      %p58 = por %p56, %p57
      %p59 = scmp.ne.s32.totalorder %s45, %s46
      %p60 = scmp.eq.s32.totalorder %s38, 1
      %p61 = por %p59, %p60
      %p63 = scmp.ne.s32.totalorder %s46, %s62
      %p64 = scmp.eq.s32.totalorder %s38, 0
      %p65 = por %p63, %p64
      %s66 = ssub.s32 %s32, %s39
      %p67 = scmp.eq.s32.totalorder %s66, 0
      %s69 = sadd.s32 %s68, 1
      %s70 = scalar_select %p67, %s68, %s69
      %p73 = pneg %p67
      %p74 = scmp.eq.s32.totalorder %s32, 1
      %p75 = por %p73, %p74
      %p76 = scmp.ne.s32.totalorder %s68, %s71
      %p77 = scmp.eq.s32.totalorder %s32, 0
      %p78 = por %p76, %p77
      %p79 = scmp.ne.s32.totalorder %s68, %s71
      %p80 = scmp.eq.s32.totalorder %s37, 1
      %p81 = por %p79, %p80
      %p82 = scmp.ne.s32.totalorder %s71, %s72
      %p83 = scmp.eq.s32.totalorder %s37, 0
      %p84 = por %p82, %p83
      %p85 = scmp.ne.s32.totalorder %s71, %s72
      %p86 = scmp.eq.s32.totalorder %s38, 1
      %p87 = por %p85, %p86
      %p89 = scmp.ne.s32.totalorder %s72, %s88
      %p90 = scmp.eq.s32.totalorder %s38, 0
      %p91 = por %p89, %p90
      %s93 = sadd.s32 %s92, 1
      %p96 = scmp.eq.s32.totalorder %s32, 1
      %p97 = scmp.ne.s32.totalorder %s92, %s94
      %p98 = scmp.eq.s32.totalorder %s32, 0
      %p99 = por %p97, %p98
      %p100 = scmp.ne.s32.totalorder %s92, %s94
      %p101 = scmp.eq.s32.totalorder %s37, 1
      %p102 = por %p100, %p101
      %p103 = scmp.ne.s32.totalorder %s94, %s95
      %p104 = scmp.eq.s32.totalorder %s37, 0
      %p105 = por %p103, %p104
      %p106 = scmp.ne.s32.totalorder %s94, %s95
      %p107 = scmp.eq.s32.totalorder %s38, 1
      %p108 = por %p106, %p107
      %p110 = scmp.ne.s32.totalorder %s95, %s109
      %p111 = scmp.eq.s32.totalorder %s38, 0
      %p112 = por %p110, %p111
      %s114 = sadd.s32 %s113, 1
      %p117 = scmp.eq.s32.totalorder %s32, 1
      %p118 = scmp.ne.s32.totalorder %s113, %s115
      %p119 = scmp.eq.s32.totalorder %s32, 0
      %p120 = por %p118, %p119
      %p121 = scmp.ne.s32.totalorder %s113, %s115
      %p122 = scmp.eq.s32.totalorder %s37, 1
      %p123 = por %p121, %p122
      %p124 = scmp.ne.s32.totalorder %s115, %s116
      %p125 = scmp.eq.s32.totalorder %s37, 0
      %p126 = por %p124, %p125
      %p127 = scmp.ne.s32.totalorder %s115, %s116
      %p128 = scmp.eq.s32.totalorder %s38, 1
      %p129 = por %p127, %p128
      %p131 = scmp.ne.s32.totalorder %s116, %s130
      %p132 = scmp.eq.s32.totalorder %s38, 0
      %p133 = por %p131, %p132
      %s135 = sadd.s32 %s134, 1
      %p138 = scmp.eq.s32.totalorder %s32, 1
      %p139 = scmp.ne.s32.totalorder %s134, %s136
      %p140 = scmp.eq.s32.totalorder %s32, 0
      %p141 = por %p139, %p140
      %p142 = scmp.ne.s32.totalorder %s134, %s136
      %p143 = scmp.eq.s32.totalorder %s37, 1
      %p144 = por %p142, %p143
      %p145 = scmp.ne.s32.totalorder %s136, %s137
      %p146 = scmp.eq.s32.totalorder %s37, 0
      %p147 = por %p145, %p146
      %p148 = scmp.ne.s32.totalorder %s136, %s137
      %p149 = scmp.eq.s32.totalorder %s38, 1
      %p150 = por %p148, %p149
      %p152 = scmp.ne.s32.totalorder %s137, %s151
      %p153 = scmp.eq.s32.totalorder %s38, 0
      %p154 = por %p152, %p153
      %s156 = sadd.s32 %s155, 1
      %p159 = scmp.eq.s32.totalorder %s32, 1
      %p160 = scmp.ne.s32.totalorder %s155, %s157
      %p161 = scmp.eq.s32.totalorder %s32, 0
      %p162 = por %p160, %p161
      %p163 = scmp.ne.s32.totalorder %s155, %s157
      %p164 = scmp.eq.s32.totalorder %s37, 1
      %p165 = por %p163, %p164
      %p166 = scmp.ne.s32.totalorder %s157, %s158
      %p167 = scmp.eq.s32.totalorder %s37, 0
      %p168 = por %p166, %p167
      %p169 = scmp.ne.s32.totalorder %s157, %s158
      %p170 = scmp.eq.s32.totalorder %s38, 1
      %p171 = por %p169, %p170
      %p173 = scmp.ne.s32.totalorder %s158, %s172
      %p174 = scmp.eq.s32.totalorder %s38, 0
      %p175 = por %p173, %p174
      %s177 = sadd.s32 %s176, 1
      %p180 = scmp.eq.s32.totalorder %s32, 1
      %p181 = scmp.ne.s32.totalorder %s176, %s178
      %p182 = scmp.eq.s32.totalorder %s32, 0
      %p183 = por %p181, %p182
      %p184 = scmp.ne.s32.totalorder %s176, %s178
      %p185 = scmp.eq.s32.totalorder %s37, 1
      %p186 = por %p184, %p185
      %p187 = scmp.ne.s32.totalorder %s178, %s179
      %p188 = scmp.eq.s32.totalorder %s37, 0
      %p189 = por %p187, %p188
      %p190 = scmp.ne.s32.totalorder %s178, %s179
      %p191 = scmp.eq.s32.totalorder %s38, 1
      %p192 = por %p190, %p191
      %p194 = scmp.ne.s32.totalorder %s179, %s193
      %p195 = scmp.eq.s32.totalorder %s38, 0
      %p196 = por %p194, %p195
      %s198 = sadd.s32 %s197, 1
      %p201 = scmp.eq.s32.totalorder %s32, 1
      %p202 = scmp.ne.s32.totalorder %s197, %s199
      %p203 = scmp.eq.s32.totalorder %s32, 0
      %p204 = por %p202, %p203
      %p205 = scmp.ne.s32.totalorder %s197, %s199
      %p206 = scmp.eq.s32.totalorder %s37, 1
      %p207 = por %p205, %p206
      %p208 = scmp.ne.s32.totalorder %s199, %s200
      %p209 = scmp.eq.s32.totalorder %s37, 0
      %p210 = por %p208, %p209
      %p211 = scmp.ne.s32.totalorder %s199, %s200
      %p212 = scmp.eq.s32.totalorder %s38, 1
      %p213 = por %p211, %p212
      %p215 = scmp.ne.s32.totalorder %s200, %s214
      %p216 = scmp.eq.s32.totalorder %s38, 0
      %p217 = por %p215, %p216
      %s219 = sadd.s32 %s218, 1
      %p222 = scmp.eq.s32.totalorder %s32, 1
      %p223 = scmp.ne.s32.totalorder %s218, %s220
      %p224 = scmp.eq.s32.totalorder %s32, 0
      %p225 = por %p223, %p224
      %p226 = scmp.ne.s32.totalorder %s218, %s220
      %p227 = scmp.eq.s32.totalorder %s37, 1
      %p228 = por %p226, %p227
      %p229 = scmp.ne.s32.totalorder %s220, %s221
      %p230 = scmp.eq.s32.totalorder %s37, 0
      %p231 = por %p229, %p230
      %p232 = scmp.ne.s32.totalorder %s220, %s221
      %p233 = scmp.eq.s32.totalorder %s38, 1
      %p234 = por %p232, %p233
      %p236 = scmp.ne.s32.totalorder %s221, %s235
      %p237 = scmp.eq.s32.totalorder %s38, 0
      %p238 = por %p236, %p237
      %s240 = sadd.s32 %s239, 1
      %p243 = scmp.eq.s32.totalorder %s32, 1
      %p244 = scmp.ne.s32.totalorder %s239, %s241
      %p245 = scmp.eq.s32.totalorder %s32, 0
      %p246 = por %p244, %p245
      %p247 = scmp.ne.s32.totalorder %s239, %s241
      %p248 = scmp.eq.s32.totalorder %s37, 1
      %p249 = por %p247, %p248
      %p250 = scmp.ne.s32.totalorder %s241, %s242
      %p251 = scmp.eq.s32.totalorder %s37, 0
      %p252 = por %p250, %p251
      %p253 = scmp.ne.s32.totalorder %s241, %s242
      %p254 = scmp.eq.s32.totalorder %s38, 1
      %p255 = por %p253, %p254
      %p257 = scmp.ne.s32.totalorder %s242, %s256
      %p258 = scmp.eq.s32.totalorder %s38, 0
      %p259 = por %p257, %p258
      %s261 = sadd.s32 %s260, 1
      %p264 = scmp.eq.s32.totalorder %s32, 1
      %p265 = scmp.ne.s32.totalorder %s260, %s262
      %p266 = scmp.eq.s32.totalorder %s32, 0
      %p267 = por %p265, %p266
      %p268 = scmp.ne.s32.totalorder %s260, %s262
      %p269 = scmp.eq.s32.totalorder %s37, 1
      %p270 = por %p268, %p269
      %p271 = scmp.ne.s32.totalorder %s262, %s263
      %p272 = scmp.eq.s32.totalorder %s37, 0
      %p273 = por %p271, %p272
      %p274 = scmp.ne.s32.totalorder %s262, %s263
      %p275 = scmp.eq.s32.totalorder %s38, 1
      %p276 = por %p274, %p275
      %p278 = scmp.ne.s32.totalorder %s263, %s277
      %p279 = scmp.eq.s32.totalorder %s38, 0
      %p280 = por %p278, %p279
      %s282 = sadd.s32 %s281, 1
      %p285 = scmp.eq.s32.totalorder %s32, 1
      %p286 = scmp.ne.s32.totalorder %s281, %s283
      %p287 = scmp.eq.s32.totalorder %s32, 0
      %p288 = por %p286, %p287
      %p289 = scmp.ne.s32.totalorder %s281, %s283
      %p290 = scmp.eq.s32.totalorder %s37, 1
      %p291 = por %p289, %p290
      %p292 = scmp.ne.s32.totalorder %s283, %s284
      %p293 = scmp.eq.s32.totalorder %s37, 0
      %p294 = por %p292, %p293
      %p295 = scmp.ne.s32.totalorder %s283, %s284
      %p296 = scmp.eq.s32.totalorder %s38, 1
      %p297 = por %p295, %p296
      %p299 = scmp.ne.s32.totalorder %s284, %s298
      %p300 = scmp.eq.s32.totalorder %s38, 0
      %p301 = por %p299, %p300
      %s303 = sadd.s32 %s302, 1
      %p306 = scmp.eq.s32.totalorder %s32, 1
      %p307 = scmp.ne.s32.totalorder %s302, %s304
      %p308 = scmp.eq.s32.totalorder %s32, 0
      %p309 = por %p307, %p308
      %p310 = scmp.ne.s32.totalorder %s302, %s304
      %p311 = scmp.eq.s32.totalorder %s37, 1
      %p312 = por %p310, %p311
      %p313 = scmp.ne.s32.totalorder %s304, %s305
      %p314 = scmp.eq.s32.totalorder %s37, 0
      %p315 = por %p313, %p314
      %p316 = scmp.ne.s32.totalorder %s304, %s305
      %p317 = scmp.eq.s32.totalorder %s38, 1
      %p318 = por %p316, %p317
      %p320 = scmp.ne.s32.totalorder %s305, %s319
      %p321 = scmp.eq.s32.totalorder %s38, 0
      %p322 = por %p320, %p321
      %s324 = sadd.s32 %s323, 1
      %p327 = scmp.eq.s32.totalorder %s32, 1
      %p328 = scmp.ne.s32.totalorder %s323, %s325
      %p329 = scmp.eq.s32.totalorder %s32, 0
      %p330 = por %p328, %p329
      %p331 = scmp.ne.s32.totalorder %s323, %s325
      %p332 = scmp.eq.s32.totalorder %s37, 1
      %p333 = por %p331, %p332
      %p334 = scmp.ne.s32.totalorder %s325, %s326
      %p335 = scmp.eq.s32.totalorder %s37, 0
      %p336 = por %p334, %p335
      %p337 = scmp.ne.s32.totalorder %s325, %s326
      %p338 = scmp.eq.s32.totalorder %s38, 1
      %p339 = por %p337, %p338
      %p341 = scmp.ne.s32.totalorder %s326, %s340
      %p342 = scmp.eq.s32.totalorder %s38, 0
      %p343 = por %p341, %p342
      %s344 = ssub.s32 %s32, %s39
      %p345 = scmp.eq.s32.totalorder %s344, 0
      %s347 = sadd.s32 %s346, 1
      %s348 = scalar_select %p345, %s346, %s347
      %p351 = pneg %p345
      %p352 = scmp.eq.s32.totalorder %s32, 1
      %p353 = por %p351, %p352
      %p354 = scmp.ne.s32.totalorder %s346, %s349
      %p355 = scmp.eq.s32.totalorder %s32, 0
      %p356 = por %p354, %p355
      %p357 = scmp.ne.s32.totalorder %s346, %s349
      %p358 = scmp.eq.s32.totalorder %s37, 1
      %p359 = por %p357, %p358
      %p360 = scmp.ne.s32.totalorder %s349, %s350
      %p361 = scmp.eq.s32.totalorder %s37, 0
      %p362 = por %p360, %p361
      %p363 = scmp.ne.s32.totalorder %s349, %s350
      %p364 = scmp.eq.s32.totalorder %s38, 1
      %p365 = por %p363, %p364
      %p367 = scmp.ne.s32.totalorder %s350, %s366
      %p368 = scmp.eq.s32.totalorder %s38, 0
      %p369 = por %p367, %p368
      %p370 = scmp.le.s32.totalorder 1, %s32
      %p371 = scmp.lt.s32.totalorder %s32, 3
      %p372 = pnand %p370, %p371
      %p373 = pneg %p372
      // Predicated region
      $region9: #{tpu_custom_call.1} parent=5 // pred_check
        _
      $region10: #{tpu_custom_call.1} parent=5 // pred_check_branch
        %375 = sbr.rel (%p372) target = $region12
      $region11: #{tpu_custom_call.1} parent=5 // pred_region
        %s376 = ssub.s32 %s32, 1
        // Predicated region
        $region13: #{tpu_custom_call.1} parent=11 // pred_check
          %p377 = pneg %p105
        $region14: #{tpu_custom_call.1} parent=11 // pred_check_branch
          %379 = sbr.rel (%p377) target = $region16
        $region15: #{tpu_custom_call.1} parent=11 // pred_region
          %s381 = ssub.s32 1024, 1024
          %382 = vsyncadd [#allocation6], %s381
          %s383 = sshll.u32 [#allocation7], 4
          %s384 = int_to_ptr.vmem [resolvable:$true] %s383
          %389 = dma.hbm_to_vmem [thread:$0]  %s2, 1024, %s384, [#allocation6], 64, 64, 4
        $region16: #{tpu_custom_call.1} parent=11 // pred_fallthru
          _
        // Predicated region
        $region17: #{tpu_custom_call.1} parent=11 // pred_check
          %p390 = pneg %p126
        $region18: #{tpu_custom_call.1} parent=11 // pred_check_branch
          %392 = sbr.rel (%p390) target = $region20
        $region19: #{tpu_custom_call.1} parent=11 // pred_region
          %s394 = ssub.s32 1024, 1024
          %395 = vsyncadd [#allocation9], %s394
          %s396 = sshll.u32 [#allocation8], 4
          %s397 = int_to_ptr.vmem [resolvable:$true] %s396
          %402 = dma.hbm_to_vmem [thread:$0]  %s3, 1024, %s397, [#allocation9], 64, 64, 4
        $region20: #{tpu_custom_call.1} parent=11 // pred_fallthru
          _
        // Predicated region
        $region21: #{tpu_custom_call.1} parent=11 // pred_check
          %p403 = pneg %p147
        $region22: #{tpu_custom_call.1} parent=11 // pred_check_branch
          %405 = sbr.rel (%p403) target = $region24
        $region23: #{tpu_custom_call.1} parent=11 // pred_region
          %s407 = ssub.s32 1024, 1024
          %408 = vsyncadd [#allocation9], %s407
          %s409 = sshll.u32 [#allocation10], 4
          %s410 = int_to_ptr.vmem [resolvable:$true] %s409
          %415 = dma.hbm_to_vmem [thread:$0]  %s4, 1024, %s410, [#allocation9], 64, 64, 4
        $region24: #{tpu_custom_call.1} parent=11 // pred_fallthru
          _
        // Predicated region
        $region25: #{tpu_custom_call.1} parent=11 // pred_check
          %p416 = pneg %p168
        $region26: #{tpu_custom_call.1} parent=11 // pred_check_branch
          %418 = sbr.rel (%p416) target = $region28
        $region27: #{tpu_custom_call.1} parent=11 // pred_region
          %s420 = ssub.s32 1024, 1024
          %421 = vsyncadd [#allocation12], %s420
          %s422 = sshll.u32 [#allocation11], 4
          %s423 = int_to_ptr.vmem [resolvable:$true] %s422
          %428 = dma.hbm_to_vmem [thread:$0]  %s5, 1024, %s423, [#allocation12], 64, 64, 4
        $region28: #{tpu_custom_call.1} parent=11 // pred_fallthru
          _
        // Predicated region
        $region29: #{tpu_custom_call.1} parent=11 // pred_check
          %p429 = pneg %p189
        $region30: #{tpu_custom_call.1} parent=11 // pred_check_branch
          %431 = sbr.rel (%p429) target = $region32
        $region31: #{tpu_custom_call.1} parent=11 // pred_region
          %s433 = ssub.s32 1024, 1024
          %434 = vsyncadd [#allocation12], %s433
          %s435 = sshll.u32 [#allocation13], 4
          %s436 = int_to_ptr.vmem [resolvable:$true] %s435
          %441 = dma.hbm_to_vmem [thread:$0]  %s6, 1024, %s436, [#allocation12], 64, 64, 4
        $region32: #{tpu_custom_call.1} parent=11 // pred_fallthru
          _
        // Predicated region
        $region33: #{tpu_custom_call.1} parent=11 // pred_check
          %p442 = pneg %p210
        $region34: #{tpu_custom_call.1} parent=11 // pred_check_branch
          %444 = sbr.rel (%p442) target = $region36
        $region35: #{tpu_custom_call.1} parent=11 // pred_region
          %s446 = ssub.s32 1024, 1024
          %447 = vsyncadd [#allocation15], %s446
          %s448 = sshll.u32 [#allocation14], 4
          %s449 = int_to_ptr.vmem [resolvable:$true] %s448
          %454 = dma.hbm_to_vmem [thread:$0]  %s7, 1024, %s449, [#allocation15], 64, 64, 4
        $region36: #{tpu_custom_call.1} parent=11 // pred_fallthru
          _
        // Predicated region
        $region37: #{tpu_custom_call.1} parent=11 // pred_check
          %p455 = pneg %p231
        $region38: #{tpu_custom_call.1} parent=11 // pred_check_branch
          %457 = sbr.rel (%p455) target = $region40
        $region39: #{tpu_custom_call.1} parent=11 // pred_region
          _
        $region40: #{tpu_custom_call.1} parent=11 // pred_fallthru
          _
        // Predicated region
        $region41: #{tpu_custom_call.1} parent=11 // pred_check
          %p458 = pneg %p252
        $region42: #{tpu_custom_call.1} parent=11 // pred_check_branch
          %460 = sbr.rel (%p458) target = $region44
        $region43: #{tpu_custom_call.1} parent=11 // pred_region
          _
        $region44: #{tpu_custom_call.1} parent=11 // pred_fallthru
          _
        // Predicated region
        $region45: #{tpu_custom_call.1} parent=11 // pred_check
          %p461 = pneg %p273
        $region46: #{tpu_custom_call.1} parent=11 // pred_check_branch
          %463 = sbr.rel (%p461) target = $region48
        $region47: #{tpu_custom_call.1} parent=11 // pred_region
          _
        $region48: #{tpu_custom_call.1} parent=11 // pred_fallthru
          _
        // Predicated region
        $region49: #{tpu_custom_call.1} parent=11 // pred_check
          %p464 = pneg %p294
        $region50: #{tpu_custom_call.1} parent=11 // pred_check_branch
          %466 = sbr.rel (%p464) target = $region52
        $region51: #{tpu_custom_call.1} parent=11 // pred_region
          _
        $region52: #{tpu_custom_call.1} parent=11 // pred_fallthru
          _
        // Predicated region
        $region53: #{tpu_custom_call.1} parent=11 // pred_check
          %p467 = pneg %p315
        $region54: #{tpu_custom_call.1} parent=11 // pred_check_branch
          %469 = sbr.rel (%p467) target = $region56
        $region55: #{tpu_custom_call.1} parent=11 // pred_region
          _
        $region56: #{tpu_custom_call.1} parent=11 // pred_fallthru
          _
        // Predicated region
        $region57: #{tpu_custom_call.1} parent=11 // pred_check
          %p470 = pneg %p336
        $region58: #{tpu_custom_call.1} parent=11 // pred_check_branch
          %472 = sbr.rel (%p470) target = $region60
        $region59: #{tpu_custom_call.1} parent=11 // pred_region
          _
        $region60: #{tpu_custom_call.1} parent=11 // pred_fallthru
          _
      $region12: #{tpu_custom_call.1} parent=5 // pred_fallthru
        _
      %p473 = scmp.lt.s32.totalorder %s32, 2
      // Predicated region
      $region61: #{tpu_custom_call.1} parent=5 // pred_check
        %p474 = pneg %p473
      $region62: #{tpu_custom_call.1} parent=5 // pred_check_branch
        %476 = sbr.rel (%p474) target = $region64
      $region63: #{tpu_custom_call.1} parent=5 // pred_region
        // Predicated region
        $region65: #{tpu_custom_call.1} parent=63 // pred_check
          %p477 = pneg %p52
        $region66: #{tpu_custom_call.1} parent=63 // pred_check_branch
          %479 = sbr.rel (%p477) target = $region68
        $region67: #{tpu_custom_call.1} parent=63 // pred_region
          %s480 = sand.u32 %s42, 1
          %s481 = scalar_lea.sflag [#allocation3], %s480
          %s482 = sand.u32 %s42, 1
          %s483 = smul.addr %s482, 4
          %s484 = scalar_lea.vmem [#allocation2], %s483
          %s486 = ssub.s32 64, 64
          %487 = vsyncadd %s481, %s486
          %s488 = smul.addr %s32, 64
          %s489 = scalar_lea.hbm %s0, %s488
          %s491 = sshll.u32 %s484, 4
          %s492 = int_to_ptr.vmem [resolvable:$true] %s491
          %494 = dma.hbm_to_vmem [thread:$0]  %s489, 64, %s492, %s481
        $region68: #{tpu_custom_call.1} parent=63 // pred_fallthru
          _
        // Predicated region
        $region69: #{tpu_custom_call.1} parent=63 // pred_check
          %p495 = pneg %p78
        $region70: #{tpu_custom_call.1} parent=63 // pred_check_branch
          %497 = sbr.rel (%p495) target = $region72
        $region71: #{tpu_custom_call.1} parent=63 // pred_region
          %s498 = sand.u32 %s32, 1
          %s499 = scalar_lea.sflag [#allocation6], %s498
          %s500 = sand.u32 %s68, 1
          %s501 = smul.addr %s500, 8
          %s502 = scalar_lea.vmem [#allocation5], %s501
          %s504 = ssub.s32 128, 128
          %505 = vsyncadd %s499, %s504
          %s506 = smul.addr %s32, 128
          %s507 = scalar_lea.hbm %s1, %s506
          %s509 = sshll.u32 %s502, 4
          %s510 = int_to_ptr.vmem [resolvable:$true] %s509
          %512 = dma.hbm_to_vmem [thread:$0]  %s507, 128, %s510, %s499
        $region72: #{tpu_custom_call.1} parent=63 // pred_fallthru
          _
      $region64: #{tpu_custom_call.1} parent=5 // pred_fallthru
        _
      %p513 = scmp.le.s32.totalorder 1, %s32
      %p514 = scmp.lt.s32.totalorder %s32, 3
      %p515 = pnand %p513, %p514
      %p516 = pneg %p515
      // Predicated region
      $region73: #{tpu_custom_call.1} parent=5 // pred_check
        _
      $region74: #{tpu_custom_call.1} parent=5 // pred_check_branch
        %518 = sbr.rel (%p515) target = $region76
      $region75: #{tpu_custom_call.1} parent=5 // pred_region
        %s519 = ssub.s32 %s32, 1
        %s520 = sand.u32 %s45, 1
        %s521 = scalar_lea.sflag [#allocation3], %s520
        %s522 = sand.u32 %s45, 1
        %s523 = smul.addr %s522, 4
        %s524 = scalar_lea.vmem [#allocation2], %s523
        // Predicated region
        $region77: #{tpu_custom_call.1} parent=75 // pred_check
          %p525 = pneg %p58
        $region78: #{tpu_custom_call.1} parent=75 // pred_check_branch
          %527 = sbr.rel (%p525) target = $region80
        $region79: #{tpu_custom_call.1} parent=75 // pred_region
          %528 = dma.done %s521, 64
        $region80: #{tpu_custom_call.1} parent=75 // pred_fallthru
          _
        %s529 = sand.u32 %s37, 1
        %s530 = scalar_lea.sflag [#allocation6], %s529
        %s531 = sand.u32 %s71, 1
        %s532 = smul.addr %s531, 8
        %s533 = scalar_lea.vmem [#allocation5], %s532
        // Predicated region
        $region81: #{tpu_custom_call.1} parent=75 // pred_check
          %p534 = pneg %p84
        $region82: #{tpu_custom_call.1} parent=75 // pred_check_branch
          %536 = sbr.rel (%p534) target = $region84
        $region83: #{tpu_custom_call.1} parent=75 // pred_region
          %537 = dma.done %s530, 128
        $region84: #{tpu_custom_call.1} parent=75 // pred_fallthru
          _
        // Predicated region
        $region85: #{tpu_custom_call.1} parent=75 // pred_check
          %p538 = pneg %p105
        $region86: #{tpu_custom_call.1} parent=75 // pred_check_branch
          %540 = sbr.rel (%p538) target = $region88
        $region87: #{tpu_custom_call.1} parent=75 // pred_region
          %541 = dma.done [#allocation6], 1024
        $region88: #{tpu_custom_call.1} parent=75 // pred_fallthru
          _
        // Predicated region
        $region89: #{tpu_custom_call.1} parent=75 // pred_check
          %p542 = pneg %p126
        $region90: #{tpu_custom_call.1} parent=75 // pred_check_branch
          %544 = sbr.rel (%p542) target = $region92
        $region91: #{tpu_custom_call.1} parent=75 // pred_region
          %545 = dma.done [#allocation9], 1024
        $region92: #{tpu_custom_call.1} parent=75 // pred_fallthru
          _
        // Predicated region
        $region93: #{tpu_custom_call.1} parent=75 // pred_check
          %p546 = pneg %p147
        $region94: #{tpu_custom_call.1} parent=75 // pred_check_branch
          %548 = sbr.rel (%p546) target = $region96
        $region95: #{tpu_custom_call.1} parent=75 // pred_region
          %549 = dma.done [#allocation9], 1024
        $region96: #{tpu_custom_call.1} parent=75 // pred_fallthru
          _
        // Predicated region
        $region97: #{tpu_custom_call.1} parent=75 // pred_check
          %p550 = pneg %p168
        $region98: #{tpu_custom_call.1} parent=75 // pred_check_branch
          %552 = sbr.rel (%p550) target = $region100
        $region99: #{tpu_custom_call.1} parent=75 // pred_region
          %553 = dma.done [#allocation12], 1024
        $region100: #{tpu_custom_call.1} parent=75 // pred_fallthru
          _
        // Predicated region
        $region101: #{tpu_custom_call.1} parent=75 // pred_check
          %p554 = pneg %p189
        $region102: #{tpu_custom_call.1} parent=75 // pred_check_branch
          %556 = sbr.rel (%p554) target = $region104
        $region103: #{tpu_custom_call.1} parent=75 // pred_region
          %557 = dma.done [#allocation12], 1024
        $region104: #{tpu_custom_call.1} parent=75 // pred_fallthru
          _
        // Predicated region
        $region105: #{tpu_custom_call.1} parent=75 // pred_check
          %p558 = pneg %p210
        $region106: #{tpu_custom_call.1} parent=75 // pred_check_branch
          %560 = sbr.rel (%p558) target = $region108
        $region107: #{tpu_custom_call.1} parent=75 // pred_region
          %561 = dma.done [#allocation15], 1024
        $region108: #{tpu_custom_call.1} parent=75 // pred_fallthru
          _
        %s562 = sand.u32 %s45, 1
        %s563 = scalar_lea.sflag [#allocation3], %s562
        %s564 = sand.u32 %s45, 1
        %s565 = smul.addr %s564, 4
        %s566 = scalar_lea.vmem [#allocation2], %s565
        %p567 = pneg %p58
        %p568 = pneg %p55
        %s569 = sand.u32 %s37, 1
        %s570 = scalar_lea.sflag [#allocation6], %s569
        %s571 = sand.u32 %s71, 1
        %s572 = smul.addr %s571, 8
        %s573 = scalar_lea.vmem [#allocation5], %s572
        %p574 = pneg %p84
        %p575 = pneg %p81
        %p576 = pneg %p105
        %p577 = pneg %p102
        %p578 = pneg %p126
        %p579 = pneg %p123
        %p580 = pneg %p147
        %p581 = pneg %p144
        %p582 = pneg %p168
        %p583 = pneg %p165
        %p584 = pneg %p189
        %p585 = pneg %p186
        %p586 = pneg %p210
        %p587 = pneg %p207
        %p588 = pneg %p231
        %p589 = pneg %p228
        %p590 = pneg %p252
        %p591 = pneg %p249
        %p592 = pneg %p273
        %p593 = pneg %p270
        %p594 = pneg %p294
        %p595 = pneg %p291
        %p596 = pneg %p315
        %p597 = pneg %p312
        %p598 = pneg %p336
        %p599 = pneg %p333
        %p600 = pneg %p362
        %p601 = pneg %p359
        %s602 = sand.u32 %s349, 1
        %s603 = scalar_lea.sflag [#allocation4], %s602
        %s604 = sand.u32 %s349, 1
        %s605 = smul.addr %s604, 8
        %s606 = scalar_lea.vmem [#allocation16], %s605
        %v608 = vld [vmem:[%s524] sm:$0xf]
        %v609 = vld [vmem:[%s533] sm:$0xff]
        %v610 = vpack.c.bf16 %v609, %v609
        %v611 = vld [vmem:[#allocation7] sm:$0xf]
        %v612 = vld [vmem:[#allocation7 + $0x4] sm:$0xf]
        %v613 = vld [vmem:[#allocation7 + $0x8] sm:$0xf]
        %v614 = vld [vmem:[#allocation7 + $0xc] sm:$0xf]
        %v615 = vld [vmem:[#allocation7 + $0x10] sm:$0xf]
        %v616 = vld [vmem:[#allocation7 + $0x14] sm:$0xf]
        %v617 = vld [vmem:[#allocation7 + $0x18] sm:$0xf]
        %v618 = vld [vmem:[#allocation7 + $0x1c] sm:$0xf]
        %v619 = vld [vmem:[#allocation7 + $0x20] sm:$0xf]
        %v620 = vld [vmem:[#allocation7 + $0x24] sm:$0xf]
        %v621 = vld [vmem:[#allocation7 + $0x28] sm:$0xf]
        %v622 = vld [vmem:[#allocation7 + $0x2c] sm:$0xf]
        %v623 = vld [vmem:[#allocation7 + $0x30] sm:$0xf]
        %v624 = vld [vmem:[#allocation7 + $0x34] sm:$0xf]
        %v625 = vld [vmem:[#allocation7 + $0x38] sm:$0xf]
        %v626 = vld [vmem:[#allocation7 + $0x3c] sm:$0xf]
        %v627 = vld [vmem:[#allocation11] sm:$0xf]
        %v628 = vld [vmem:[#allocation11 + $0x4] sm:$0xf]
        %v629 = vld [vmem:[#allocation11 + $0x8] sm:$0xf]
        %v630 = vld [vmem:[#allocation11 + $0xc] sm:$0xf]
        %v631 = vld [vmem:[#allocation11 + $0x10] sm:$0xf]
        %v632 = vld [vmem:[#allocation11 + $0x14] sm:$0xf]
        %v633 = vld [vmem:[#allocation11 + $0x18] sm:$0xf]
        %v634 = vld [vmem:[#allocation11 + $0x1c] sm:$0xf]
        %v635 = vld [vmem:[#allocation11 + $0x20] sm:$0xf]
        %v636 = vld [vmem:[#allocation11 + $0x24] sm:$0xf]
        %v637 = vld [vmem:[#allocation11 + $0x28] sm:$0xf]
        %v638 = vld [vmem:[#allocation11 + $0x2c] sm:$0xf]
        %v639 = vld [vmem:[#allocation11 + $0x30] sm:$0xf]
        %v640 = vld [vmem:[#allocation11 + $0x34] sm:$0xf]
        %v641 = vld [vmem:[#allocation11 + $0x38] sm:$0xf]
        %v642 = vld [vmem:[#allocation11 + $0x3c] sm:$0xf]
        %v659 = vunpack.c.l.b16 %v627
        %v660 = vunpack.c.l.b16 %v628
        %v661 = vunpack.c.l.b16 %v629
        %v662 = vunpack.c.l.b16 %v630
        %v663 = vunpack.c.l.b16 %v631
        %v664 = vunpack.c.l.b16 %v632
        %v665 = vunpack.c.l.b16 %v633
        %v666 = vunpack.c.l.b16 %v634
        %v667 = vunpack.c.l.b16 %v635
        %v668 = vunpack.c.l.b16 %v636
        %v669 = vunpack.c.l.b16 %v637
        %v670 = vunpack.c.l.b16 %v638
        %v671 = vunpack.c.l.b16 %v639
        %v672 = vunpack.c.l.b16 %v640
        %v673 = vunpack.c.l.b16 %v641
        %v674 = vunpack.c.l.b16 %v642
        %v675 = vpack.c.b16 %v660, %v659
        %v676 = vpack.c.b16 %v662, %v661
        %v677 = vpack.c.b16 %v664, %v663
        %v678 = vpack.c.b16 %v666, %v665
        %v679 = vpack.c.b16 %v668, %v667
        %v680 = vpack.c.b16 %v670, %v669
        %v681 = vpack.c.b16 %v672, %v671
        %v682 = vpack.c.b16 %v674, %v673
        %691 = vmatprep.subr.bf16.mxu0 0
        %692 = vmatpush1.bf16.msra.mxu0 %v682
        %693 = vmatprep.subr.bf16.mxu0 0
        %694 = vmatpush1.bf16.msra.mxu0 %v681
        %695 = vmatprep.subr.bf16.mxu0 0
        %696 = vmatpush1.bf16.msra.mxu0 %v680
        %697 = vmatprep.subr.bf16.mxu0 0
        %698 = vmatpush1.bf16.msra.mxu0 %v679
        %699 = vmatprep.subr.bf16.mxu0 0
        %700 = vmatpush1.bf16.msra.mxu0 %v678
        %701 = vmatprep.subr.bf16.mxu0 0
        %702 = vmatpush1.bf16.msra.mxu0 %v677
        %703 = vmatprep.subr.bf16.mxu0 0
        %704 = vmatpush1.bf16.msra.mxu0 %v676
        %705 = vmatprep.subr.bf16.mxu0 0
        %706 = vmatpush1.bf16.msra.mxu0 %v675
        %707 = vmatprep.subr.bf16.mxu0 0
        %708 = vmatpush2.bf16.msra.mxu0 0
        %709 = vmatprep.subr.bf16.mxu0 0
        %710 = vmatpush2.bf16.msra.mxu0 0
        %711 = vmatprep.subr.bf16.mxu0 0
        %712 = vmatpush2.bf16.msra.mxu0 0
        %713 = vmatprep.subr.bf16.mxu0 0
        %714 = vmatpush2.bf16.msra.mxu0 0
        %715 = vmatprep.subr.bf16.mxu0 0
        %716 = vmatpush2.bf16.msra.mxu0 0
        %717 = vmatprep.subr.bf16.mxu0 0
        %718 = vmatpush2.bf16.msra.mxu0 0
        %719 = vmatprep.subr.bf16.mxu0 0
        %720 = vmatpush2.bf16.msra.mxu0 0
        %721 = vmatprep.subr.bf16.mxu0 0
        %722 = vmatpush2.bf16.msra.mxu0 0
        %723 = vmatprep.mubr.bf16.mxu0 0
        %724 = vmatmul.mubr.bf16.gmra.mxu0 %v610
        %v725 = vpop.f32.mrf.mxu0
        %v726 = vadd.f32 0.0, %v725
        %v727 = vpop.f32.mrf.mxu0
        %v728 = vpop.f32.mrf.mxu0
        %v729 = vpop.f32.mrf.mxu0
        %730 = vdwg.mxu0
        %v747 = vunpack.c.l.b16 %v611
        %v748 = vunpack.c.l.b16 %v612
        %v749 = vunpack.c.l.b16 %v613
        %v750 = vunpack.c.l.b16 %v614
        %v751 = vunpack.c.l.b16 %v615
        %v752 = vunpack.c.l.b16 %v616
        %v753 = vunpack.c.l.b16 %v617
        %v754 = vunpack.c.l.b16 %v618
        %v755 = vunpack.c.l.b16 %v619
        %v756 = vunpack.c.l.b16 %v620
        %v757 = vunpack.c.l.b16 %v621
        %v758 = vunpack.c.l.b16 %v622
        %v759 = vunpack.c.l.b16 %v623
        %v760 = vunpack.c.l.b16 %v624
        %v761 = vunpack.c.l.b16 %v625
        %v762 = vunpack.c.l.b16 %v626
        %v763 = vpack.c.b16 %v748, %v747
        %v764 = vpack.c.b16 %v750, %v749
        %v765 = vpack.c.b16 %v752, %v751
        %v766 = vpack.c.b16 %v754, %v753
        %v767 = vpack.c.b16 %v756, %v755
        %v768 = vpack.c.b16 %v758, %v757
        %v769 = vpack.c.b16 %v760, %v759
        %v770 = vpack.c.b16 %v762, %v761
        %779 = vmatprep.subr.bf16.mxu0 0
        %780 = vmatpush1.bf16.msra.mxu0 %v770
        %781 = vmatprep.subr.bf16.mxu0 0
        %782 = vmatpush1.bf16.msra.mxu0 %v769
        %783 = vmatprep.subr.bf16.mxu0 0
        %784 = vmatpush1.bf16.msra.mxu0 %v768
        %785 = vmatprep.subr.bf16.mxu0 0
        %786 = vmatpush1.bf16.msra.mxu0 %v767
        %787 = vmatprep.subr.bf16.mxu0 0
        %788 = vmatpush1.bf16.msra.mxu0 %v766
        %789 = vmatprep.subr.bf16.mxu0 0
        %790 = vmatpush1.bf16.msra.mxu0 %v765
        %791 = vmatprep.subr.bf16.mxu0 0
        %792 = vmatpush1.bf16.msra.mxu0 %v764
        %793 = vmatprep.subr.bf16.mxu0 0
        %794 = vmatpush1.bf16.msra.mxu0 %v763
        %795 = vmatprep.subr.bf16.mxu0 0
        %796 = vmatpush2.bf16.msra.mxu0 0
        %797 = vmatprep.subr.bf16.mxu0 0
        %798 = vmatpush2.bf16.msra.mxu0 0
        %799 = vmatprep.subr.bf16.mxu0 0
        %800 = vmatpush2.bf16.msra.mxu0 0
        %801 = vmatprep.subr.bf16.mxu0 0
        %802 = vmatpush2.bf16.msra.mxu0 0
        %803 = vmatprep.subr.bf16.mxu0 0
        %804 = vmatpush2.bf16.msra.mxu0 0
        %805 = vmatprep.subr.bf16.mxu0 0
        %806 = vmatpush2.bf16.msra.mxu0 0
        %807 = vmatprep.subr.bf16.mxu0 0
        %808 = vmatpush2.bf16.msra.mxu0 0
        %809 = vmatprep.subr.bf16.mxu0 0
        %810 = vmatpush2.bf16.msra.mxu0 0
        %811 = vmatprep.mubr.bf16.mxu0 0
        %812 = vmatmul.mubr.bf16.gmra.mxu0 %v608
        %v813 = vpop.f32.mrf.mxu0
        %v814 = vadd.f32 %v726, %v813
        %v815 = vpop.f32.mrf.mxu0
        %v816 = vpop.f32.mrf.mxu0
        %v817 = vpop.f32.mrf.mxu0
        %818 = vdwg.mxu0
        %v819 = vld [vmem:[%s8] sm:$0x1]
        %v821 = vlaneseq
        %v822 = vshrl.u32 %v821, 7
        %v823 = vsub.s32 0, %v822
        %v824 = vrot.slane %v819, %v823
        %v826 = vadd.f32 %v814, %v824
        %v827 = vxor.u32 %v826, 2147483648
        %v828 = vmul.f32 %v827, 1.442695
        %v829 = vpow.pop %v828
        %v830 = vadd.f32 %v829, 1.0
        %v831 = vrcp.pop %v830
        %v832 = vmul.f32 1.0, %v831
        %v833 = vld [vmem:[#allocation8] sm:$0xf]
        %v834 = vld [vmem:[#allocation8 + $0x4] sm:$0xf]
        %v835 = vld [vmem:[#allocation8 + $0x8] sm:$0xf]
        %v836 = vld [vmem:[#allocation8 + $0xc] sm:$0xf]
        %v837 = vld [vmem:[#allocation8 + $0x10] sm:$0xf]
        %v838 = vld [vmem:[#allocation8 + $0x14] sm:$0xf]
        %v839 = vld [vmem:[#allocation8 + $0x18] sm:$0xf]
        %v840 = vld [vmem:[#allocation8 + $0x1c] sm:$0xf]
        %v841 = vld [vmem:[#allocation8 + $0x20] sm:$0xf]
        %v842 = vld [vmem:[#allocation8 + $0x24] sm:$0xf]
        %v843 = vld [vmem:[#allocation8 + $0x28] sm:$0xf]
        %v844 = vld [vmem:[#allocation8 + $0x2c] sm:$0xf]
        %v845 = vld [vmem:[#allocation8 + $0x30] sm:$0xf]
        %v846 = vld [vmem:[#allocation8 + $0x34] sm:$0xf]
        %v847 = vld [vmem:[#allocation8 + $0x38] sm:$0xf]
        %v848 = vld [vmem:[#allocation8 + $0x3c] sm:$0xf]
        %v849 = vld [vmem:[#allocation13] sm:$0xf]
        %v850 = vld [vmem:[#allocation13 + $0x4] sm:$0xf]
        %v851 = vld [vmem:[#allocation13 + $0x8] sm:$0xf]
        %v852 = vld [vmem:[#allocation13 + $0xc] sm:$0xf]
        %v853 = vld [vmem:[#allocation13 + $0x10] sm:$0xf]
        %v854 = vld [vmem:[#allocation13 + $0x14] sm:$0xf]
        %v855 = vld [vmem:[#allocation13 + $0x18] sm:$0xf]
        %v856 = vld [vmem:[#allocation13 + $0x1c] sm:$0xf]
        %v857 = vld [vmem:[#allocation13 + $0x20] sm:$0xf]
        %v858 = vld [vmem:[#allocation13 + $0x24] sm:$0xf]
        %v859 = vld [vmem:[#allocation13 + $0x28] sm:$0xf]
        %v860 = vld [vmem:[#allocation13 + $0x2c] sm:$0xf]
        %v861 = vld [vmem:[#allocation13 + $0x30] sm:$0xf]
        %v862 = vld [vmem:[#allocation13 + $0x34] sm:$0xf]
        %v863 = vld [vmem:[#allocation13 + $0x38] sm:$0xf]
        %v864 = vld [vmem:[#allocation13 + $0x3c] sm:$0xf]
        %v881 = vunpack.c.l.b16 %v849
        %v882 = vunpack.c.l.b16 %v850
        %v883 = vunpack.c.l.b16 %v851
        %v884 = vunpack.c.l.b16 %v852
        %v885 = vunpack.c.l.b16 %v853
        %v886 = vunpack.c.l.b16 %v854
        %v887 = vunpack.c.l.b16 %v855
        %v888 = vunpack.c.l.b16 %v856
        %v889 = vunpack.c.l.b16 %v857
        %v890 = vunpack.c.l.b16 %v858
        %v891 = vunpack.c.l.b16 %v859
        %v892 = vunpack.c.l.b16 %v860
        %v893 = vunpack.c.l.b16 %v861
        %v894 = vunpack.c.l.b16 %v862
        %v895 = vunpack.c.l.b16 %v863
        %v896 = vunpack.c.l.b16 %v864
        %v897 = vpack.c.b16 %v882, %v881
        %v898 = vpack.c.b16 %v884, %v883
        %v899 = vpack.c.b16 %v886, %v885
        %v900 = vpack.c.b16 %v888, %v887
        %v901 = vpack.c.b16 %v890, %v889
        %v902 = vpack.c.b16 %v892, %v891
        %v903 = vpack.c.b16 %v894, %v893
        %v904 = vpack.c.b16 %v896, %v895
        %913 = vmatprep.subr.bf16.mxu0 0
        %914 = vmatpush1.bf16.msra.mxu0 %v904
        %915 = vmatprep.subr.bf16.mxu0 0
        %916 = vmatpush1.bf16.msra.mxu0 %v903
        %917 = vmatprep.subr.bf16.mxu0 0
        %918 = vmatpush1.bf16.msra.mxu0 %v902
        %919 = vmatprep.subr.bf16.mxu0 0
        %920 = vmatpush1.bf16.msra.mxu0 %v901
        %921 = vmatprep.subr.bf16.mxu0 0
        %922 = vmatpush1.bf16.msra.mxu0 %v900
        %923 = vmatprep.subr.bf16.mxu0 0
        %924 = vmatpush1.bf16.msra.mxu0 %v899
        %925 = vmatprep.subr.bf16.mxu0 0
        %926 = vmatpush1.bf16.msra.mxu0 %v898
        %927 = vmatprep.subr.bf16.mxu0 0
        %928 = vmatpush1.bf16.msra.mxu0 %v897
        %929 = vmatprep.subr.bf16.mxu0 0
        %930 = vmatpush2.bf16.msra.mxu0 0
        %931 = vmatprep.subr.bf16.mxu0 0
        %932 = vmatpush2.bf16.msra.mxu0 0
        %933 = vmatprep.subr.bf16.mxu0 0
        %934 = vmatpush2.bf16.msra.mxu0 0
        %935 = vmatprep.subr.bf16.mxu0 0
        %936 = vmatpush2.bf16.msra.mxu0 0
        %937 = vmatprep.subr.bf16.mxu0 0
        %938 = vmatpush2.bf16.msra.mxu0 0
        %939 = vmatprep.subr.bf16.mxu0 0
        %940 = vmatpush2.bf16.msra.mxu0 0
        %941 = vmatprep.subr.bf16.mxu0 0
        %942 = vmatpush2.bf16.msra.mxu0 0
        %943 = vmatprep.subr.bf16.mxu0 0
        %944 = vmatpush2.bf16.msra.mxu0 0
        %945 = vmatprep.mubr.bf16.mxu0 0
        %946 = vmatmul.mubr.bf16.gmra.mxu0 %v610
        %v947 = vpop.f32.mrf.mxu0
        %v948 = vadd.f32 0.0, %v947
        %v949 = vpop.f32.mrf.mxu0
        %v950 = vpop.f32.mrf.mxu0
        %v951 = vpop.f32.mrf.mxu0
        %952 = vdwg.mxu0
        %v969 = vunpack.c.l.b16 %v833
        %v970 = vunpack.c.l.b16 %v834
        %v971 = vunpack.c.l.b16 %v835
        %v972 = vunpack.c.l.b16 %v836
        %v973 = vunpack.c.l.b16 %v837
        %v974 = vunpack.c.l.b16 %v838
        %v975 = vunpack.c.l.b16 %v839
        %v976 = vunpack.c.l.b16 %v840
        %v977 = vunpack.c.l.b16 %v841
        %v978 = vunpack.c.l.b16 %v842
        %v979 = vunpack.c.l.b16 %v843
        %v980 = vunpack.c.l.b16 %v844
        %v981 = vunpack.c.l.b16 %v845
        %v982 = vunpack.c.l.b16 %v846
        %v983 = vunpack.c.l.b16 %v847
        %v984 = vunpack.c.l.b16 %v848
        %v985 = vpack.c.b16 %v970, %v969
        %v986 = vpack.c.b16 %v972, %v971
        %v987 = vpack.c.b16 %v974, %v973
        %v988 = vpack.c.b16 %v976, %v975
        %v989 = vpack.c.b16 %v978, %v977
        %v990 = vpack.c.b16 %v980, %v979
        %v991 = vpack.c.b16 %v982, %v981
        %v992 = vpack.c.b16 %v984, %v983
        %1001 = vmatprep.subr.bf16.mxu0 0
        %1002 = vmatpush1.bf16.msra.mxu0 %v992
        %1003 = vmatprep.subr.bf16.mxu0 0
        %1004 = vmatpush1.bf16.msra.mxu0 %v991
        %1005 = vmatprep.subr.bf16.mxu0 0
        %1006 = vmatpush1.bf16.msra.mxu0 %v990
        %1007 = vmatprep.subr.bf16.mxu0 0
        %1008 = vmatpush1.bf16.msra.mxu0 %v989
        %1009 = vmatprep.subr.bf16.mxu0 0
        %1010 = vmatpush1.bf16.msra.mxu0 %v988
        %1011 = vmatprep.subr.bf16.mxu0 0
        %1012 = vmatpush1.bf16.msra.mxu0 %v987
        %1013 = vmatprep.subr.bf16.mxu0 0
        %1014 = vmatpush1.bf16.msra.mxu0 %v986
        %1015 = vmatprep.subr.bf16.mxu0 0
        %1016 = vmatpush1.bf16.msra.mxu0 %v985
        %1017 = vmatprep.subr.bf16.mxu0 0
        %1018 = vmatpush2.bf16.msra.mxu0 0
        %1019 = vmatprep.subr.bf16.mxu0 0
        %1020 = vmatpush2.bf16.msra.mxu0 0
        %1021 = vmatprep.subr.bf16.mxu0 0
        %1022 = vmatpush2.bf16.msra.mxu0 0
        %1023 = vmatprep.subr.bf16.mxu0 0
        %1024 = vmatpush2.bf16.msra.mxu0 0
        %1025 = vmatprep.subr.bf16.mxu0 0
        %1026 = vmatpush2.bf16.msra.mxu0 0
        %1027 = vmatprep.subr.bf16.mxu0 0
        %1028 = vmatpush2.bf16.msra.mxu0 0
        %1029 = vmatprep.subr.bf16.mxu0 0
        %1030 = vmatpush2.bf16.msra.mxu0 0
        %1031 = vmatprep.subr.bf16.mxu0 0
        %1032 = vmatpush2.bf16.msra.mxu0 0
        %1033 = vmatprep.mubr.bf16.mxu0 0
        %1034 = vmatmul.mubr.bf16.gmra.mxu0 %v608
        %v1035 = vpop.f32.mrf.mxu0
        %v1036 = vadd.f32 %v948, %v1035
        %v1037 = vpop.f32.mrf.mxu0
        %v1038 = vpop.f32.mrf.mxu0
        %v1039 = vpop.f32.mrf.mxu0
        %1040 = vdwg.mxu0
        %v1041 = vld [vmem:[%s9] sm:$0x1]
        %v1043 = vlaneseq
        %v1044 = vshrl.u32 %v1043, 7
        %v1045 = vsub.s32 0, %v1044
        %v1046 = vrot.slane %v1041, %v1045
        %v1048 = vadd.f32 %v1036, %v1046
        %v1049 = vxor.u32 %v1048, 2147483648
        %v1050 = vmul.f32 %v1049, 1.442695
        %v1051 = vpow.pop %v1050
        %v1052 = vadd.f32 %v1051, 1.0
        %v1053 = vrcp.pop %v1052
        %v1054 = vmul.f32 1.0, %v1053
        %v1055 = vld [vmem:[#allocation10] sm:$0xf]
        %v1056 = vld [vmem:[#allocation10 + $0x4] sm:$0xf]
        %v1057 = vld [vmem:[#allocation10 + $0x8] sm:$0xf]
        %v1058 = vld [vmem:[#allocation10 + $0xc] sm:$0xf]
        %v1059 = vld [vmem:[#allocation10 + $0x10] sm:$0xf]
        %v1060 = vld [vmem:[#allocation10 + $0x14] sm:$0xf]
        %v1061 = vld [vmem:[#allocation10 + $0x18] sm:$0xf]
        %v1062 = vld [vmem:[#allocation10 + $0x1c] sm:$0xf]
        %v1063 = vld [vmem:[#allocation10 + $0x20] sm:$0xf]
        %v1064 = vld [vmem:[#allocation10 + $0x24] sm:$0xf]
        %v1065 = vld [vmem:[#allocation10 + $0x28] sm:$0xf]
        %v1066 = vld [vmem:[#allocation10 + $0x2c] sm:$0xf]
        %v1067 = vld [vmem:[#allocation10 + $0x30] sm:$0xf]
        %v1068 = vld [vmem:[#allocation10 + $0x34] sm:$0xf]
        %v1069 = vld [vmem:[#allocation10 + $0x38] sm:$0xf]
        %v1070 = vld [vmem:[#allocation10 + $0x3c] sm:$0xf]
        %v1071 = vld [vmem:[%s10] sm:$0x1]
        %v1073 = vlaneseq
        %v1074 = vshrl.u32 %v1073, 7
        %v1075 = vsub.s32 0, %v1074
        %v1076 = vrot.slane %v1071, %v1075
        %v1094 = vunpack.c.l.b16 %v1055
        %v1095 = vunpack.c.l.b16 %v1056
        %v1096 = vunpack.c.l.b16 %v1057
        %v1097 = vunpack.c.l.b16 %v1058
        %v1098 = vunpack.c.l.b16 %v1059
        %v1099 = vunpack.c.l.b16 %v1060
        %v1100 = vunpack.c.l.b16 %v1061
        %v1101 = vunpack.c.l.b16 %v1062
        %v1102 = vunpack.c.l.b16 %v1063
        %v1103 = vunpack.c.l.b16 %v1064
        %v1104 = vunpack.c.l.b16 %v1065
        %v1105 = vunpack.c.l.b16 %v1066
        %v1106 = vunpack.c.l.b16 %v1067
        %v1107 = vunpack.c.l.b16 %v1068
        %v1108 = vunpack.c.l.b16 %v1069
        %v1109 = vunpack.c.l.b16 %v1070
        %v1110 = vpack.c.b16 %v1095, %v1094
        %v1111 = vpack.c.b16 %v1097, %v1096
        %v1112 = vpack.c.b16 %v1099, %v1098
        %v1113 = vpack.c.b16 %v1101, %v1100
        %v1114 = vpack.c.b16 %v1103, %v1102
        %v1115 = vpack.c.b16 %v1105, %v1104
        %v1116 = vpack.c.b16 %v1107, %v1106
        %v1117 = vpack.c.b16 %v1109, %v1108
        %1126 = vmatprep.subr.bf16.mxu0 0
        %1127 = vmatpush1.bf16.msra.mxu0 %v1117
        %1128 = vmatprep.subr.bf16.mxu0 0
        %1129 = vmatpush1.bf16.msra.mxu0 %v1116
        %1130 = vmatprep.subr.bf16.mxu0 0
        %1131 = vmatpush1.bf16.msra.mxu0 %v1115
        %1132 = vmatprep.subr.bf16.mxu0 0
        %1133 = vmatpush1.bf16.msra.mxu0 %v1114
        %1134 = vmatprep.subr.bf16.mxu0 0
        %1135 = vmatpush1.bf16.msra.mxu0 %v1113
        %1136 = vmatprep.subr.bf16.mxu0 0
        %1137 = vmatpush1.bf16.msra.mxu0 %v1112
        %1138 = vmatprep.subr.bf16.mxu0 0
        %1139 = vmatpush1.bf16.msra.mxu0 %v1111
        %1140 = vmatprep.subr.bf16.mxu0 0
        %1141 = vmatpush1.bf16.msra.mxu0 %v1110
        %1142 = vmatprep.subr.bf16.mxu0 0
        %1143 = vmatpush2.bf16.msra.mxu0 0
        %1144 = vmatprep.subr.bf16.mxu0 0
        %1145 = vmatpush2.bf16.msra.mxu0 0
        %1146 = vmatprep.subr.bf16.mxu0 0
        %1147 = vmatpush2.bf16.msra.mxu0 0
        %1148 = vmatprep.subr.bf16.mxu0 0
        %1149 = vmatpush2.bf16.msra.mxu0 0
        %1150 = vmatprep.subr.bf16.mxu0 0
        %1151 = vmatpush2.bf16.msra.mxu0 0
        %1152 = vmatprep.subr.bf16.mxu0 0
        %1153 = vmatpush2.bf16.msra.mxu0 0
        %1154 = vmatprep.subr.bf16.mxu0 0
        %1155 = vmatpush2.bf16.msra.mxu0 0
        %1156 = vmatprep.subr.bf16.mxu0 0
        %1157 = vmatpush2.bf16.msra.mxu0 0
        %1158 = vmatprep.mubr.bf16.mxu0 0
        %1159 = vmatmul.mubr.bf16.gmra.mxu0 %v608
        %v1160 = vpop.f32.mrf.mxu0
        %v1161 = vadd.f32 %v1076, %v1160
        %v1162 = vpop.f32.mrf.mxu0
        %v1163 = vpop.f32.mrf.mxu0
        %v1164 = vpop.f32.mrf.mxu0
        %1165 = vdwg.mxu0
        %v1166 = vld [vmem:[#allocation14] sm:$0xf]
        %v1167 = vld [vmem:[#allocation14 + $0x4] sm:$0xf]
        %v1168 = vld [vmem:[#allocation14 + $0x8] sm:$0xf]
        %v1169 = vld [vmem:[#allocation14 + $0xc] sm:$0xf]
        %v1170 = vld [vmem:[#allocation14 + $0x10] sm:$0xf]
        %v1171 = vld [vmem:[#allocation14 + $0x14] sm:$0xf]
        %v1172 = vld [vmem:[#allocation14 + $0x18] sm:$0xf]
        %v1173 = vld [vmem:[#allocation14 + $0x1c] sm:$0xf]
        %v1174 = vld [vmem:[#allocation14 + $0x20] sm:$0xf]
        %v1175 = vld [vmem:[#allocation14 + $0x24] sm:$0xf]
        %v1176 = vld [vmem:[#allocation14 + $0x28] sm:$0xf]
        %v1177 = vld [vmem:[#allocation14 + $0x2c] sm:$0xf]
        %v1178 = vld [vmem:[#allocation14 + $0x30] sm:$0xf]
        %v1179 = vld [vmem:[#allocation14 + $0x34] sm:$0xf]
        %v1180 = vld [vmem:[#allocation14 + $0x38] sm:$0xf]
        %v1181 = vld [vmem:[#allocation14 + $0x3c] sm:$0xf]
        %v1182 = vld [vmem:[%s11] sm:$0x1]
        %v1184 = vlaneseq
        %v1185 = vshrl.u32 %v1184, 7
        %v1186 = vsub.s32 0, %v1185
        %v1187 = vrot.slane %v1182, %v1186
        %v1205 = vunpack.c.l.b16 %v1166
        %v1206 = vunpack.c.l.b16 %v1167
        %v1207 = vunpack.c.l.b16 %v1168
        %v1208 = vunpack.c.l.b16 %v1169
        %v1209 = vunpack.c.l.b16 %v1170
        %v1210 = vunpack.c.l.b16 %v1171
        %v1211 = vunpack.c.l.b16 %v1172
        %v1212 = vunpack.c.l.b16 %v1173
        %v1213 = vunpack.c.l.b16 %v1174
        %v1214 = vunpack.c.l.b16 %v1175
        %v1215 = vunpack.c.l.b16 %v1176
        %v1216 = vunpack.c.l.b16 %v1177
        %v1217 = vunpack.c.l.b16 %v1178
        %v1218 = vunpack.c.l.b16 %v1179
        %v1219 = vunpack.c.l.b16 %v1180
        %v1220 = vunpack.c.l.b16 %v1181
        %v1221 = vpack.c.b16 %v1206, %v1205
        %v1222 = vpack.c.b16 %v1208, %v1207
        %v1223 = vpack.c.b16 %v1210, %v1209
        %v1224 = vpack.c.b16 %v1212, %v1211
        %v1225 = vpack.c.b16 %v1214, %v1213
        %v1226 = vpack.c.b16 %v1216, %v1215
        %v1227 = vpack.c.b16 %v1218, %v1217
        %v1228 = vpack.c.b16 %v1220, %v1219
        %1237 = vmatprep.subr.bf16.mxu0 0
        %1238 = vmatpush1.bf16.msra.mxu0 %v1228
        %1239 = vmatprep.subr.bf16.mxu0 0
        %1240 = vmatpush1.bf16.msra.mxu0 %v1227
        %1241 = vmatprep.subr.bf16.mxu0 0
        %1242 = vmatpush1.bf16.msra.mxu0 %v1226
        %1243 = vmatprep.subr.bf16.mxu0 0
        %1244 = vmatpush1.bf16.msra.mxu0 %v1225
        %1245 = vmatprep.subr.bf16.mxu0 0
        %1246 = vmatpush1.bf16.msra.mxu0 %v1224
        %1247 = vmatprep.subr.bf16.mxu0 0
        %1248 = vmatpush1.bf16.msra.mxu0 %v1223
        %1249 = vmatprep.subr.bf16.mxu0 0
        %1250 = vmatpush1.bf16.msra.mxu0 %v1222
        %1251 = vmatprep.subr.bf16.mxu0 0
        %1252 = vmatpush1.bf16.msra.mxu0 %v1221
        %1253 = vmatprep.subr.bf16.mxu0 0
        %1254 = vmatpush2.bf16.msra.mxu0 0
        %1255 = vmatprep.subr.bf16.mxu0 0
        %1256 = vmatpush2.bf16.msra.mxu0 0
        %1257 = vmatprep.subr.bf16.mxu0 0
        %1258 = vmatpush2.bf16.msra.mxu0 0
        %1259 = vmatprep.subr.bf16.mxu0 0
        %1260 = vmatpush2.bf16.msra.mxu0 0
        %1261 = vmatprep.subr.bf16.mxu0 0
        %1262 = vmatpush2.bf16.msra.mxu0 0
        %1263 = vmatprep.subr.bf16.mxu0 0
        %1264 = vmatpush2.bf16.msra.mxu0 0
        %1265 = vmatprep.subr.bf16.mxu0 0
        %1266 = vmatpush2.bf16.msra.mxu0 0
        %1267 = vmatprep.subr.bf16.mxu0 0
        %1268 = vmatpush2.bf16.msra.mxu0 0
        %1269 = vmatprep.mubr.bf16.mxu0 0
        %1270 = vmatmul.mubr.bf16.gmra.mxu0 %v610
        %v1271 = vpop.f32.mrf.mxu0
        %v1272 = vadd.f32 %v1187, %v1271
        %v1273 = vpop.f32.mrf.mxu0
        %v1274 = vpop.f32.mrf.mxu0
        %v1275 = vpop.f32.mrf.mxu0
        %1276 = vdwg.mxu0
        %v1277 = vmul.f32 %v832, %v1272
        %v1278 = vadd.f32 %v1161, %v1277
        %v1279 = vtanh.pop %v1278
        %v1280 = vsub.f32 1.0, %v1054
        %v1281 = vmul.f32 %v1280, %v1279
        %v1282 = vmul.f32 %v1054, %v609
        %v1283 = vadd.f32 %v1281, %v1282
        %v1284 = vadd.f32 %v1283, %v609
        %1285 = vadd.xlane.f32.xlu0 %v1284
        %v1286 = vpop.xlane.xlu0 %1285
        %v1287 = vrcp.pop 128.0
        %v1288 = vmul.f32 %v1286, %v1287
        %v1289 = vsub.f32 %v1284, %v1288
        %v1290 = vmul.f32 %v1289, %v1289
        %1291 = vadd.xlane.f32.xlu0 %v1290
        %v1292 = vpop.xlane.xlu0 %1291
        %v1293 = vmul.f32 %v1292, %v1287
        %v1294 = vadd.f32 %v1293, 1e-05
        %v1295 = vrsqrt.pop %v1294
        %v1296 = vmul.f32 %v1289, %v1295
        %v1297 = vld [vmem:[%s12] sm:$0x1]
        %v1299 = vlaneseq
        %v1300 = vshrl.u32 %v1299, 7
        %v1301 = vsub.s32 0, %v1300
        %v1302 = vrot.slane %v1297, %v1301
        %v1304 = vmul.f32 %v1296, %v1302
        %v1305 = vld [vmem:[%s13] sm:$0x1]
        %v1307 = vlaneseq
        %v1308 = vshrl.u32 %v1307, 7
        %v1309 = vsub.s32 0, %v1308
        %v1310 = vrot.slane %v1305, %v1309
        %v1312 = vadd.f32 %v1304, %v1310
        %1313 = vst [vmem:[%s606] sm:$0xff] %v1312
        %s1314 = sand.u32 %s349, 1
        %s1315 = scalar_lea.sflag [#allocation4], %s1314
        %s1316 = sand.u32 %s349, 1
        %s1317 = smul.addr %s1316, 8
        %s1318 = scalar_lea.vmem [#allocation16], %s1317
        // Predicated region
        $region109: #{tpu_custom_call.1} parent=75 // pred_check
          %p1319 = pneg %p359
        $region110: #{tpu_custom_call.1} parent=75 // pred_check_branch
          %1321 = sbr.rel (%p1319) target = $region112
        $region111: #{tpu_custom_call.1} parent=75 // pred_region
          %s1323 = ssub.s32 128, 128
          %1324 = vsyncadd %s1315, %s1323
          %s1325 = smul.addr %s37, 128
          %s1326 = scalar_lea.hbm %s14, %s1325
          %s1328 = sshll.u32 %s1318, 4
          %s1329 = int_to_ptr.vmem [resolvable:$true] %s1328
          %1331 = dma.vmem_to_hbm [thread:$0]  %s1329, 128, %s1326, %s1315
        $region112: #{tpu_custom_call.1} parent=75 // pred_fallthru
          _
      $region76: #{tpu_custom_call.1} parent=5 // pred_fallthru
        _
      %p1332 = scmp.le.s32.totalorder 2, %s32
      // Predicated region
      $region113: #{tpu_custom_call.1} parent=5 // pred_check
        %p1333 = pneg %p1332
      $region114: #{tpu_custom_call.1} parent=5 // pred_check_branch
        %1335 = sbr.rel (%p1333) target = $region116
      $region115: #{tpu_custom_call.1} parent=5 // pred_region
        %s1336 = ssub.s32 %s32, 2
        // Predicated region
        $region117: #{tpu_custom_call.1} parent=115 // pred_check
          %p1337 = pneg %p365
        $region118: #{tpu_custom_call.1} parent=115 // pred_check_branch
          %1339 = sbr.rel (%p1337) target = $region120
        $region119: #{tpu_custom_call.1} parent=115 // pred_region
          %s1340 = sand.u32 %s350, 1
          %s1341 = scalar_lea.sflag [#allocation4], %s1340
          %s1342 = sand.u32 %s350, 1
          %s1343 = smul.addr %s1342, 8
          %s1344 = scalar_lea.vmem [#allocation16], %s1343
          %1345 = dma.done %s1341, 128
        $region120: #{tpu_custom_call.1} parent=115 // pred_fallthru
          _
      $region116: #{tpu_custom_call.1} parent=5 // pred_fallthru
        _
    $region6: #{tpu_custom_call.1} parent=1 // loop_footer
      %s36 = sadd.s32 1, %s32
    $region7: #{tpu_custom_call.1} parent=1 // loop_footer_branch
      %31 = sbr.rel target = $region3
    $region8: #{tpu_custom_call.1} parent=1 // loop_exit
      _
    %1346 = vsyncpa [#allocation3], 1
    %s1347 = scalar_lea.sflag [#allocation3], 1
    %1348 = vsyncpa %s1347, 1
    %1349 = vsyncpa [#allocation6], 1
    %s1350 = scalar_lea.sflag [#allocation6], 1
    %1351 = vsyncpa %s1350, 1
    %1352 = vsyncpa [#allocation9], 1
    %1353 = vsyncpa [#allocation12], 1
    %1354 = vsyncpa [#allocation15], 1
    %1355 = vsyncpa [#allocation4], 1
    %s1356 = scalar_lea.sflag [#allocation4], 1
    %1357 = vsyncpa %s1356, 1

</llo_original>
